<compile_context>
chip_gen: v5e
topology: v5e:2x2
jax: 0.10.0
libtpu: 0.0.40
codegen_flags: <defaults>
</compile_context>

<pallas_src>
import functools
import math

import jax
import jax.numpy as jnp
from jax.experimental import pallas as pl
from jax.experimental.pallas import tpu as pltpu

# ----------------------------- config --------------------------------------
VOCAB = 256
DIM = 64
N_LAYERS = 2
N_HEADS = 4                       # n_qheads
HEAD_DIM = DIM // N_HEADS         # 16
HALF = HEAD_DIM // 2              # 8 rotary frequencies per head
HIDDEN = 128                      # SwiGLU hidden dim
MAX_SEQ = 16
NORM_EPS = 1e-5
# dropout p = 0.0 (eval-mode dropout is identity)


# ----------------------------- fused kernel ---------------------------------
def _fused_forward_kernel(tok_ref, emb_ref, w_in_ref, w_out_ref, rope_ref,
                          lm_head_ref, o_ref, *, B, T, eps):
    BT = B * T
    D = DIM
    V = VOCAB

    # -------- embedding lookup fused as a one-hot MXU matmul ----------------
    tok = tok_ref[...]                                       # (BT, 1) int32
    vocab_iota = jax.lax.broadcasted_iota(jnp.int32, (BT, V), 1)
    onehot = (vocab_iota == tok).astype(jnp.bfloat16)        # (BT, V), exact 0/1
    x = jnp.dot(onehot, emb_ref[...],
                preferred_element_type=jnp.float32)          # (BT, D) f32 residual
    # TODO(synk): self.drop (nn.Dropout) is identity in eval mode; not kernelized.

    # -------- constants, built once outside the layer loop ------------------
    rr = jax.lax.broadcasted_iota(jnp.int32, (T, T), 0)
    cc = jax.lax.broadcasted_iota(jnp.int32, (T, T), 1)
    neg_mask = jnp.where(cc <= rr, 0.0, -1e30).astype(jnp.float32)   # additive mask

    rope = rope_ref[...]                                     # (2, MAX_SEQ, 2D) f32
    cos_b = rope[0, 0:T, :][None]                            # (1, T, 2D)
    sin_b = rope[1, 0:T, :][None]                            # signed: [-sin | +sin]

    def rmsnorm(v):                                          # gains folded into weights
        ms = jnp.mean(v * v, axis=-1, keepdims=True)
        return v * jax.lax.rsqrt(ms + eps)

    def mm(a, w):                                            # bf16 MXU, f32 accumulation
        return jnp.dot(a.astype(jnp.bfloat16), w,
                       preferred_element_type=jnp.float32)

    for l in range(N_LAYERS):                                # tiny model: keep unrolled
        w_in = w_in_ref[l]                                   # (D, 2*HIDDEN + 5*D) bf16
        w_out = w_out_ref[l]                                 # (D + HIDDEN, D)     bf16
        w_ffn = w_in[:, :2 * HIDDEN]                         # [w1 | w3]      (D, 256)
        w_attn = w_in[:, 2 * HIDDEN:]                        # [q|k|qsw|ksw|v] (D, 320)
        wo = w_out[:D, :]
        w2 = w_out[D:, :]

        # ------------------ attention block --------------------------------
        h = rmsnorm(x)                                       # attn_norm gain folded
        proj = mm(h, w_attn)                                 # (BT, 5D) f32, lane-dense
        qk = proj[:, :2 * D].reshape(B, T, 2 * D)            # per-head [real | imag]
        qk_sw = proj[:, 2 * D:4 * D].reshape(B, T, 2 * D)    # per-head [imag | real]
        v3 = proj[:, 4 * D:].reshape(B, T, D).astype(jnp.bfloat16)

        # full-width RoPE — the half-swap was baked into the projection columns,
        # 1/sqrt(head_dim) is baked into the q / q_swapped columns.
        qk_rot = (qk * cos_b + qk_sw * sin_b).astype(jnp.bfloat16)
        q3 = qk_rot[:, :, :D]                                # (B, T, D) bf16
        k3 = qk_rot[:, :, D:]

        heads = []
        for hh in range(N_HEADS):                            # 4 bf16 K=16 dots / layer
            sl = slice(hh * HEAD_DIM, (hh + 1) * HEAD_DIM)
            s = jnp.einsum('bqd,bkd->bqk', q3[:, :, sl], k3[:, :, sl],
                           preferred_element_type=jnp.float32)       # (B, T, T)
            s = s + neg_mask                                          # causal
            p = jnp.exp(s - jnp.max(s, axis=-1, keepdims=True))
            p = p * pl.reciprocal(jnp.sum(p, axis=-1, keepdims=True),
                                  approx=True)                        # EUP divide
            heads.append(jnp.einsum('bqk,bkd->bqd', p.astype(jnp.bfloat16),
                                    v3[:, :, sl],
                                    preferred_element_type=jnp.float32))
        attn = jnp.concatenate(heads, axis=-1).reshape(BT, D)
        x = x + mm(attn, wo)                                 # fused residual add

        # ------------------ feed-forward (SwiGLU) --------------------------
        h2 = rmsnorm(x)                                      # ffn_norm gain folded
        gu = mm(h2, w_ffn)                                   # (BT, 2*HIDDEN)
        g = gu[:, :HIDDEN]
        u = gu[:, HIDDEN:]
        x = x + mm(g * jax.nn.sigmoid(g) * u, w2)            # fused residual add

    # -------- final norm + tied lm_head, LAST position only -----------------
    x_last = x.reshape(B, T, D)[:, T - 1:T, :].reshape(B, D)
    o_ref[...] = mm(rmsnorm(x_last), lm_head_ref[...])       # (B, VOCAB)


# --------------------------- model (glue) -----------------------------------
def precompute_freqs_cis(head_dim, end, theta=10000.0):
    freqs = 1.0 / (theta ** (jnp.arange(0, head_dim, 2)[: head_dim // 2]
                             .astype(jnp.float32) / head_dim))
    t = jnp.arange(end, dtype=jnp.float32)
    freqs = jnp.outer(t, freqs)
    return jnp.cos(freqs), jnp.sin(freqs)             # each (end, head_dim // 2)


def _rope_perms():
    """Column permutations for wq / wk.

    perm    : per-head [real_0..7 | imag_0..7] channel layout.
    perm_sw : same layout with the two halves swapped per head, so
              q_rot = q_perm * cos + q_perm_sw * sin_signed needs no in-kernel
              shuffle (the "rotate-half" lives in the weights).
    """
    perm, perm_sw = [], []
    for h in range(N_HEADS):
        base = h * HEAD_DIM
        re = [base + 2 * j for j in range(HALF)]
        im = [base + 2 * j + 1 for j in range(HALF)]
        perm += re + im
        perm_sw += im + re
    return (jnp.asarray(perm, dtype=jnp.int32),
            jnp.asarray(perm_sw, dtype=jnp.int32))


def init_params(key):
    key, k = jax.random.split(key)
    emb = jax.random.normal(k, (VOCAB, DIM), jnp.float32) * 0.02   # tied weight
    perm, perm_sw = _rope_perms()
    scale = 1.0 / math.sqrt(HEAD_DIM)               # folded into q / q_sw columns

    w_in_l, w_out_l = [], []
    for _ in range(N_LAYERS):
        ws = {}
        for name, shape in [("wq", (DIM, DIM)), ("wk", (DIM, DIM)),
                            ("wv", (DIM, DIM)), ("wo", (DIM, DIM)),
                            ("w1", (DIM, HIDDEN)), ("w3", (DIM, HIDDEN)),
                            ("w2", (HIDDEN, DIM))]:
            key, k = jax.random.split(key)
            ws[name] = jax.random.normal(k, shape, jnp.float32) * 0.02
        attn_gain = jnp.ones((DIM,), jnp.float32)   # RMSNorm gains (folded below)
        ffn_gain = jnp.ones((DIM,), jnp.float32)
        # fused attention projection: [q | k | q_swapped | k_swapped | v],
        # RoPE column permutation + score scale + attn_norm gain pre-folded.
        w_attn = jnp.concatenate(
            [ws["wq"][:, perm] * scale, ws["wk"][:, perm],
             ws["wq"][:, perm_sw] * scale, ws["wk"][:, perm_sw],
             ws["wv"]], axis=1) * attn_gain[:, None]                 # (D, 5D)
        w_ffn = jnp.concatenate([ws["w1"], ws["w3"]],
                                axis=1) * ffn_gain[:, None]          # (D, 2*HIDDEN)
        w_in_l.append(jnp.concatenate([w_ffn, w_attn], axis=1))      # (D, 576)
        w_out_l.append(jnp.concatenate([ws["wo"], ws["w2"]], axis=0))  # (192, D)

    final_gain = jnp.ones((DIM,), jnp.float32)      # final RMSNorm gain (folded)

    # rope tables for the packed 128-lane [q | k] slab, precomputed for MAX_SEQ:
    # per-head block of cos is [cos | cos], of sin is [-sin | +sin].
    cos, sin = precompute_freqs_cis(HEAD_DIM, MAX_SEQ)               # (MAX_SEQ, HALF)
    cos_hd = jnp.concatenate([cos, cos], axis=-1)                    # (MAX_SEQ, 16)
    sin_hd = jnp.concatenate([-sin, sin], axis=-1)
    rope = jnp.stack([jnp.tile(cos_hd, (1, 2 * N_HEADS)),
                      jnp.tile(sin_hd, (1, 2 * N_HEADS))]).astype(jnp.float32)

    return {
        "emb": emb.astype(jnp.bfloat16),                               # (V, D)
        "lm_head_t": (emb * final_gain[None, :]).T.astype(jnp.bfloat16),  # (D, V), tied
        "w_in": jnp.stack(w_in_l).astype(jnp.bfloat16),                # (L, D, 576)
        "w_out": jnp.stack(w_out_l).astype(jnp.bfloat16),              # (L, 192, D)
        "rope": rope,                                                  # (2, MAX_SEQ, 2D) f32
    }


def _full_spec(shape):
    nd = len(shape)
    return pl.BlockSpec(shape, lambda i, _nd=nd: (0,) * _nd)


def forward(params, tokens):
    B, T = tokens.shape
    tok2d = tokens.reshape(B * T, 1).astype(jnp.int32)

    kernel = functools.partial(_fused_forward_kernel, B=B, T=T, eps=NORM_EPS)
    operands = (tok2d, params["emb"], params["w_in"], params["w_out"],
                params["rope"], params["lm_head_t"])

    logits_last = pl.pallas_call(
        kernel,
        out_shape=jax.ShapeDtypeStruct((B, VOCAB), jnp.float32),
        grid=(1,),
        in_specs=[_full_spec(a.shape) for a in operands],
        out_specs=_full_spec((B, VOCAB)),
        compiler_params=pltpu.CompilerParams(
            dimension_semantics=("arbitrary",)),
    )(*operands)

    # inference path: logits for the last position only, shape (B, 1, VOCAB)
    return logits_last[:, None, :]
    # TODO(synk): training branch (cross-entropy over all positions) and
    # generate()'s torch.multinomial sampling stay host-side / un-kernelized.


# ------------------------------ main ----------------------------------------
if __name__ == "__main__":
    key = jax.random.PRNGKey(0)
    pkey, tkey = jax.random.split(key)
    params = init_params(pkey)
    tokens = jax.random.randint(tkey, (2, 8), 0, VOCAB, dtype=jnp.int32)

    logits = jax.jit(forward)(params, tokens)
    logits = jax.block_until_ready(logits)

    assert logits.shape == (2, 1, VOCAB), logits.shape
    assert bool(jnp.all(jnp.isfinite(logits)))
    print("KERNEL_OK")
</pallas_src>

<mosaic_0001>
module attributes {stable_mosaic.version = 11 : i64} {
  func.func @_fused_forward_kernel(%arg0: i32, %arg1: memref<16x1xi32, #tpu.memory_space<vmem>>, %arg2: memref<256x64xbf16, #tpu.memory_space<vmem>>, %arg3: memref<2x64x576xbf16, #tpu.memory_space<vmem>>, %arg4: memref<2x192x64xbf16, #tpu.memory_space<vmem>>, %arg5: memref<2x16x128xf32, #tpu.memory_space<vmem>>, %arg6: memref<64x256xbf16, #tpu.memory_space<vmem>>, %arg7: memref<2x256xf32, #tpu.memory_space<vmem>>) attributes {dimension_semantics = [#tpu.dimension_semantics<arbitrary>], iteration_bounds = array<i64: 1>, scalar_prefetch = 0 : i64, scratch_operands = 0 : i64, tpu.core_type = #tpu.core_type<tc>, window_params = [{pipeline_mode = #tpu.pipeline_mode<synchronous>, transform_indices = @transform_0, window_bounds = array<i64: 16, 1>}, {pipeline_mode = #tpu.pipeline_mode<synchronous>, transform_indices = @transform_1, window_bounds = array<i64: 256, 64>}, {pipeline_mode = #tpu.pipeline_mode<synchronous>, transform_indices = @transform_2, window_bounds = array<i64: 2, 64, 576>}, {pipeline_mode = #tpu.pipeline_mode<synchronous>, transform_indices = @transform_3, window_bounds = array<i64: 2, 192, 64>}, {pipeline_mode = #tpu.pipeline_mode<synchronous>, transform_indices = @transform_4, window_bounds = array<i64: 2, 16, 128>}, {pipeline_mode = #tpu.pipeline_mode<synchronous>, transform_indices = @transform_5, window_bounds = array<i64: 64, 256>}, {pipeline_mode = #tpu.pipeline_mode<synchronous>, transform_indices = @transform_6, window_bounds = array<i64: 2, 256>}]} {
    %c0 = arith.constant 0 : index
    %c0_0 = arith.constant 0 : index
    %0 = vector.load %arg1[%c0, %c0_0] : memref<16x1xi32, #tpu.memory_space<vmem>>, vector<16x1xi32>
    %1 = tpu.iota {dimensions = array<i32: 1>} : vector<16x256xi32>
    %2 = vector.broadcast %0 : vector<16x1xi32> to vector<16x256xi32>
    %3 = arith.cmpi eq, %1, %2 : vector<16x256xi32>
    %4 = arith.extui %3 : vector<16x256xi1> to vector<16x256xi32>
    %5 = arith.sitofp %4 : vector<16x256xi32> to vector<16x256xf32>
    %6 = arith.truncf %5 : vector<16x256xf32> to vector<16x256xbf16>
    %c0_1 = arith.constant 0 : index
    %c0_2 = arith.constant 0 : index
    %7 = vector.load %arg2[%c0_1, %c0_2] : memref<256x64xbf16, #tpu.memory_space<vmem>>, vector<256x64xbf16>
    %cst = arith.constant dense<0.000000e+00> : vector<16x64xf32>
    %8 = tpu.matmul %6, %7, %cst {dimension_numbers = #tpu.dot_dimension_numbers<[1], [0], [0], [1], [0, 0, 1, 1], [], []>} : vector<16x256xbf16>, vector<256x64xbf16>, vector<16x64xf32> -> vector<16x64xf32>
    %9 = tpu.iota {dimensions = array<i32: 0>} : vector<8x8xi32>
    %10 = tpu.iota {dimensions = array<i32: 1>} : vector<8x8xi32>
    %11 = arith.cmpi sle, %10, %9 : vector<8x8xi32>
    %cst_3 = arith.constant 0.000000e+00 : f32
    %cst_4 = arith.constant -1.000000e+30 : f32
    %12 = vector.broadcast %cst_3 : f32 to vector<8x8xf32>
    %13 = vector.broadcast %cst_4 : f32 to vector<8x8xf32>
    %14 = arith.select %11, %12, %13 : vector<8x8xi1>, vector<8x8xf32>
    %c0_5 = arith.constant 0 : index
    %c0_6 = arith.constant 0 : index
    %c0_7 = arith.constant 0 : index
    %15 = vector.load %arg5[%c0_5, %c0_6, %c0_7] : memref<2x16x128xf32, #tpu.memory_space<vmem>>, vector<2x16x128xf32>
    %16 = vector.extract_strided_slice %15 {offsets = [0, 0, 0], sizes = [1, 8, 128], strides = [1, 1, 1]} : vector<2x16x128xf32> to vector<1x8x128xf32>
    %17 = vector.shape_cast %16 : vector<1x8x128xf32> to vector<8x128xf32>
    %18 = vector.shape_cast %17 : vector<8x128xf32> to vector<1x8x128xf32>
    %19 = vector.extract_strided_slice %15 {offsets = [1, 0, 0], sizes = [1, 8, 128], strides = [1, 1, 1]} : vector<2x16x128xf32> to vector<1x8x128xf32>
    %20 = vector.shape_cast %19 : vector<1x8x128xf32> to vector<8x128xf32>
    %21 = vector.shape_cast %20 : vector<8x128xf32> to vector<1x8x128xf32>
    %c0_8 = arith.constant 0 : index
    %c0_9 = arith.constant 0 : index
    %c0_10 = arith.constant 0 : index
    %22 = vector.load %arg3[%c0_8, %c0_9, %c0_10] : memref<2x64x576xbf16, #tpu.memory_space<vmem>>, vector<1x64x576xbf16>
    %23 = vector.shape_cast %22 : vector<1x64x576xbf16> to vector<64x576xbf16>
    %c0_11 = arith.constant 0 : index
    %c0_12 = arith.constant 0 : index
    %c0_13 = arith.constant 0 : index
    %24 = vector.load %arg4[%c0_11, %c0_12, %c0_13] : memref<2x192x64xbf16, #tpu.memory_space<vmem>>, vector<1x192x64xbf16>
    %25 = vector.shape_cast %24 : vector<1x192x64xbf16> to vector<192x64xbf16>
    %26 = vector.extract_strided_slice %23 {offsets = [0, 0], sizes = [64, 256], strides = [1, 1]} : vector<64x576xbf16> to vector<64x256xbf16>
    %27 = vector.extract_strided_slice %23 {offsets = [0, 256], sizes = [64, 320], strides = [1, 1]} : vector<64x576xbf16> to vector<64x320xbf16>
    %28 = vector.extract_strided_slice %25 {offsets = [0, 0], sizes = [64, 64], strides = [1, 1]} : vector<192x64xbf16> to vector<64x64xbf16>
    %29 = vector.extract_strided_slice %25 {offsets = [64, 0], sizes = [128, 64], strides = [1, 1]} : vector<192x64xbf16> to vector<128x64xbf16>
    %30 = arith.mulf %8, %8 : vector<16x64xf32>
    %cst_14 = arith.constant dense<0.000000e+00> : vector<16xf32>
    %31 = vector.multi_reduction <add>, %30, %cst_14 [1] : vector<16x64xf32> to vector<16xf32>
    %32 = vector.shape_cast %31 : vector<16xf32> to vector<16x1xf32>
    %cst_15 = arith.constant 6.400000e+01 : f32
    %33 = vector.broadcast %cst_15 : f32 to vector<16x1xf32>
    %34 = arith.divf %32, %33 : vector<16x1xf32>
    %cst_16 = arith.constant 9.99999974E-6 : f32
    %35 = vector.broadcast %cst_16 : f32 to vector<16x1xf32>
    %36 = arith.addf %34, %35 : vector<16x1xf32>
    %37 = math.rsqrt %36 : vector<16x1xf32>
    %38 = vector.broadcast %37 : vector<16x1xf32> to vector<16x64xf32>
    %39 = arith.mulf %8, %38 : vector<16x64xf32>
    %40 = arith.truncf %39 : vector<16x64xf32> to vector<16x64xbf16>
    %cst_17 = arith.constant dense<0.000000e+00> : vector<16x320xf32>
    %41 = tpu.matmul %40, %27, %cst_17 {dimension_numbers = #tpu.dot_dimension_numbers<[1], [0], [0], [1], [0, 0, 1, 1], [], []>} : vector<16x64xbf16>, vector<64x320xbf16>, vector<16x320xf32> -> vector<16x320xf32>
    %42 = vector.extract_strided_slice %41 {offsets = [0, 0], sizes = [16, 128], strides = [1, 1]} : vector<16x320xf32> to vector<16x128xf32>
    %43 = vector.shape_cast %42 : vector<16x128xf32> to vector<2x8x128xf32>
    %44 = vector.extract_strided_slice %41 {offsets = [0, 128], sizes = [16, 128], strides = [1, 1]} : vector<16x320xf32> to vector<16x128xf32>
    %45 = vector.shape_cast %44 : vector<16x128xf32> to vector<2x8x128xf32>
    %46 = vector.extract_strided_slice %41 {offsets = [0, 256], sizes = [16, 64], strides = [1, 1]} : vector<16x320xf32> to vector<16x64xf32>
    %47 = vector.shape_cast %46 : vector<16x64xf32> to vector<2x8x64xf32>
    %48 = arith.truncf %47 : vector<2x8x64xf32> to vector<2x8x64xbf16>
    %49 = vector.broadcast %18 : vector<1x8x128xf32> to vector<2x8x128xf32>
    %50 = arith.mulf %43, %49 : vector<2x8x128xf32>
    %51 = vector.broadcast %21 : vector<1x8x128xf32> to vector<2x8x128xf32>
    %52 = arith.mulf %45, %51 : vector<2x8x128xf32>
    %53 = arith.addf %50, %52 : vector<2x8x128xf32>
    %54 = arith.truncf %53 : vector<2x8x128xf32> to vector<2x8x128xbf16>
    %55 = vector.extract_strided_slice %54 {offsets = [0, 0, 0], sizes = [2, 8, 64], strides = [1, 1, 1]} : vector<2x8x128xbf16> to vector<2x8x64xbf16>
    %56 = vector.extract_strided_slice %54 {offsets = [0, 0, 64], sizes = [2, 8, 64], strides = [1, 1, 1]} : vector<2x8x128xbf16> to vector<2x8x64xbf16>
    %57 = vector.extract_strided_slice %55 {offsets = [0, 0, 0], sizes = [2, 8, 16], strides = [1, 1, 1]} : vector<2x8x64xbf16> to vector<2x8x16xbf16>
    %58 = vector.extract_strided_slice %56 {offsets = [0, 0, 0], sizes = [2, 8, 16], strides = [1, 1, 1]} : vector<2x8x64xbf16> to vector<2x8x16xbf16>
    "tpu.trace_start"() <{level = 10 : i32, message = "bqd,bkd->bqk"}> : () -> ()
    %cst_18 = arith.constant dense<0.000000e+00> : vector<2x8x8xf32>
    %59 = tpu.matmul %57, %58, %cst_18 {dimension_numbers = #tpu.dot_dimension_numbers<[2], [2], [1], [1], [0, 0, 0, 1, 1, 1], [0], [0]>} : vector<2x8x16xbf16>, vector<2x8x16xbf16>, vector<2x8x8xf32> -> vector<2x8x8xf32>
    "tpu.trace_stop"() : () -> ()
    %60 = vector.shape_cast %14 : vector<8x8xf32> to vector<1x8x8xf32>
    %61 = vector.broadcast %60 : vector<1x8x8xf32> to vector<2x8x8xf32>
    %62 = arith.addf %59, %61 : vector<2x8x8xf32>
    %cst_19 = arith.constant dense<0xFF800000> : vector<2x8xf32>
    %63 = vector.multi_reduction <maximumf>, %62, %cst_19 [2] : vector<2x8x8xf32> to vector<2x8xf32>
    %64 = vector.shape_cast %63 : vector<2x8xf32> to vector<2x8x1xf32>
    %65 = vector.broadcast %64 : vector<2x8x1xf32> to vector<2x8x8xf32>
    %66 = arith.subf %62, %65 : vector<2x8x8xf32>
    %67 = math.exp %66 : vector<2x8x8xf32>
    %cst_20 = arith.constant dense<0.000000e+00> : vector<2x8xf32>
    %68 = vector.multi_reduction <add>, %67, %cst_20 [2] : vector<2x8x8xf32> to vector<2x8xf32>
    %69 = vector.shape_cast %68 : vector<2x8xf32> to vector<2x8x1xf32>
    %70 = tpu.reciprocal %69 {approx = true} : vector<2x8x1xf32> -> vector<2x8x1xf32>
    %71 = vector.broadcast %70 : vector<2x8x1xf32> to vector<2x8x8xf32>
    %72 = arith.mulf %67, %71 : vector<2x8x8xf32>
    %73 = arith.truncf %72 : vector<2x8x8xf32> to vector<2x8x8xbf16>
    %74 = vector.extract_strided_slice %48 {offsets = [0, 0, 0], sizes = [2, 8, 16], strides = [1, 1, 1]} : vector<2x8x64xbf16> to vector<2x8x16xbf16>
    "tpu.trace_start"() <{level = 10 : i32, message = "bqk,bkd->bqd"}> : () -> ()
    %cst_21 = arith.constant dense<0.000000e+00> : vector<2x8x16xf32>
    %75 = tpu.matmul %73, %74, %cst_21 {dimension_numbers = #tpu.dot_dimension_numbers<[2], [1], [1], [2], [0, 0, 0, 1, 1, 2], [0], [0]>} : vector<2x8x8xbf16>, vector<2x8x16xbf16>, vector<2x8x16xf32> -> vector<2x8x16xf32>
    "tpu.trace_stop"() : () -> ()
    %76 = vector.extract_strided_slice %55 {offsets = [0, 0, 16], sizes = [2, 8, 16], strides = [1, 1, 1]} : vector<2x8x64xbf16> to vector<2x8x16xbf16>
    %77 = vector.extract_strided_slice %56 {offsets = [0, 0, 16], sizes = [2, 8, 16], strides = [1, 1, 1]} : vector<2x8x64xbf16> to vector<2x8x16xbf16>
    "tpu.trace_start"() <{level = 10 : i32, message = "bqd,bkd->bqk"}> : () -> ()
    %cst_22 = arith.constant dense<0.000000e+00> : vector<2x8x8xf32>
    %78 = tpu.matmul %76, %77, %cst_22 {dimension_numbers = #tpu.dot_dimension_numbers<[2], [2], [1], [1], [0, 0, 0, 1, 1, 1], [0], [0]>} : vector<2x8x16xbf16>, vector<2x8x16xbf16>, vector<2x8x8xf32> -> vector<2x8x8xf32>
    "tpu.trace_stop"() : () -> ()
    %79 = vector.shape_cast %14 : vector<8x8xf32> to vector<1x8x8xf32>
    %80 = vector.broadcast %79 : vector<1x8x8xf32> to vector<2x8x8xf32>
    %81 = arith.addf %78, %80 : vector<2x8x8xf32>
    %cst_23 = arith.constant dense<0xFF800000> : vector<2x8xf32>
    %82 = vector.multi_reduction <maximumf>, %81, %cst_23 [2] : vector<2x8x8xf32> to vector<2x8xf32>
    %83 = vector.shape_cast %82 : vector<2x8xf32> to vector<2x8x1xf32>
    %84 = vector.broadcast %83 : vector<2x8x1xf32> to vector<2x8x8xf32>
    %85 = arith.subf %81, %84 : vector<2x8x8xf32>
    %86 = math.exp %85 : vector<2x8x8xf32>
    %cst_24 = arith.constant dense<0.000000e+00> : vector<2x8xf32>
    %87 = vector.multi_reduction <add>, %86, %cst_24 [2] : vector<2x8x8xf32> to vector<2x8xf32>
    %88 = vector.shape_cast %87 : vector<2x8xf32> to vector<2x8x1xf32>
    %89 = tpu.reciprocal %88 {approx = true} : vector<2x8x1xf32> -> vector<2x8x1xf32>
    %90 = vector.broadcast %89 : vector<2x8x1xf32> to vector<2x8x8xf32>
    %91 = arith.mulf %86, %90 : vector<2x8x8xf32>
    %92 = arith.truncf %91 : vector<2x8x8xf32> to vector<2x8x8xbf16>
    %93 = vector.extract_strided_slice %48 {offsets = [0, 0, 16], sizes = [2, 8, 16], strides = [1, 1, 1]} : vector<2x8x64xbf16> to vector<2x8x16xbf16>
    "tpu.trace_start"() <{level = 10 : i32, message = "bqk,bkd->bqd"}> : () -> ()
    %cst_25 = arith.constant dense<0.000000e+00> : vector<2x8x16xf32>
    %94 = tpu.matmul %92, %93, %cst_25 {dimension_numbers = #tpu.dot_dimension_numbers<[2], [1], [1], [2], [0, 0, 0, 1, 1, 2], [0], [0]>} : vector<2x8x8xbf16>, vector<2x8x16xbf16>, vector<2x8x16xf32> -> vector<2x8x16xf32>
    "tpu.trace_stop"() : () -> ()
    %95 = vector.extract_strided_slice %55 {offsets = [0, 0, 32], sizes = [2, 8, 16], strides = [1, 1, 1]} : vector<2x8x64xbf16> to vector<2x8x16xbf16>
    %96 = vector.extract_strided_slice %56 {offsets = [0, 0, 32], sizes = [2, 8, 16], strides = [1, 1, 1]} : vector<2x8x64xbf16> to vector<2x8x16xbf16>
    "tpu.trace_start"() <{level = 10 : i32, message = "bqd,bkd->bqk"}> : () -> ()
    %cst_26 = arith.constant dense<0.000000e+00> : vector<2x8x8xf32>
    %97 = tpu.matmul %95, %96, %cst_26 {dimension_numbers = #tpu.dot_dimension_numbers<[2], [2], [1], [1], [0, 0, 0, 1, 1, 1], [0], [0]>} : vector<2x8x16xbf16>, vector<2x8x16xbf16>, vector<2x8x8xf32> -> vector<2x8x8xf32>
    "tpu.trace_stop"() : () -> ()
    %98 = vector.shape_cast %14 : vector<8x8xf32> to vector<1x8x8xf32>
    %99 = vector.broadcast %98 : vector<1x8x8xf32> to vector<2x8x8xf32>
    %100 = arith.addf %97, %99 : vector<2x8x8xf32>
    %cst_27 = arith.constant dense<0xFF800000> : vector<2x8xf32>
    %101 = vector.multi_reduction <maximumf>, %100, %cst_27 [2] : vector<2x8x8xf32> to vector<2x8xf32>
    %102 = vector.shape_cast %101 : vector<2x8xf32> to vector<2x8x1xf32>
    %103 = vector.broadcast %102 : vector<2x8x1xf32> to vector<2x8x8xf32>
    %104 = arith.subf %100, %103 : vector<2x8x8xf32>
    %105 = math.exp %104 : vector<2x8x8xf32>
    %cst_28 = arith.constant dense<0.000000e+00> : vector<2x8xf32>
    %106 = vector.multi_reduction <add>, %105, %cst_28 [2] : vector<2x8x8xf32> to vector<2x8xf32>
    %107 = vector.shape_cast %106 : vector<2x8xf32> to vector<2x8x1xf32>
    %108 = tpu.reciprocal %107 {approx = true} : vector<2x8x1xf32> -> vector<2x8x1xf32>
    %109 = vector.broadcast %108 : vector<2x8x1xf32> to vector<2x8x8xf32>
    %110 = arith.mulf %105, %109 : vector<2x8x8xf32>
    %111 = arith.truncf %110 : vector<2x8x8xf32> to vector<2x8x8xbf16>
    %112 = vector.extract_strided_slice %48 {offsets = [0, 0, 32], sizes = [2, 8, 16], strides = [1, 1, 1]} : vector<2x8x64xbf16> to vector<2x8x16xbf16>
    "tpu.trace_start"() <{level = 10 : i32, message = "bqk,bkd->bqd"}> : () -> ()
    %cst_29 = arith.constant dense<0.000000e+00> : vector<2x8x16xf32>
    %113 = tpu.matmul %111, %112, %cst_29 {dimension_numbers = #tpu.dot_dimension_numbers<[2], [1], [1], [2], [0, 0, 0, 1, 1, 2], [0], [0]>} : vector<2x8x8xbf16>, vector<2x8x16xbf16>, vector<2x8x16xf32> -> vector<2x8x16xf32>
    "tpu.trace_stop"() : () -> ()
    %114 = vector.extract_strided_slice %55 {offsets = [0, 0, 48], sizes = [2, 8, 16], strides = [1, 1, 1]} : vector<2x8x64xbf16> to vector<2x8x16xbf16>
    %115 = vector.extract_strided_slice %56 {offsets = [0, 0, 48], sizes = [2, 8, 16], strides = [1, 1, 1]} : vector<2x8x64xbf16> to vector<2x8x16xbf16>
    "tpu.trace_start"() <{level = 10 : i32, message = "bqd,bkd->bqk"}> : () -> ()
    %cst_30 = arith.constant dense<0.000000e+00> : vector<2x8x8xf32>
    %116 = tpu.matmul %114, %115, %cst_30 {dimension_numbers = #tpu.dot_dimension_numbers<[2], [2], [1], [1], [0, 0, 0, 1, 1, 1], [0], [0]>} : vector<2x8x16xbf16>, vector<2x8x16xbf16>, vector<2x8x8xf32> -> vector<2x8x8xf32>
    "tpu.trace_stop"() : () -> ()
    %117 = vector.shape_cast %14 : vector<8x8xf32> to vector<1x8x8xf32>
    %118 = vector.broadcast %117 : vector<1x8x8xf32> to vector<2x8x8xf32>
    %119 = arith.addf %116, %118 : vector<2x8x8xf32>
    %cst_31 = arith.constant dense<0xFF800000> : vector<2x8xf32>
    %120 = vector.multi_reduction <maximumf>, %119, %cst_31 [2] : vector<2x8x8xf32> to vector<2x8xf32>
    %121 = vector.shape_cast %120 : vector<2x8xf32> to vector<2x8x1xf32>
    %122 = vector.broadcast %121 : vector<2x8x1xf32> to vector<2x8x8xf32>
    %123 = arith.subf %119, %122 : vector<2x8x8xf32>
    %124 = math.exp %123 : vector<2x8x8xf32>
    %cst_32 = arith.constant dense<0.000000e+00> : vector<2x8xf32>
    %125 = vector.multi_reduction <add>, %124, %cst_32 [2] : vector<2x8x8xf32> to vector<2x8xf32>
    %126 = vector.shape_cast %125 : vector<2x8xf32> to vector<2x8x1xf32>
    %127 = tpu.reciprocal %126 {approx = true} : vector<2x8x1xf32> -> vector<2x8x1xf32>
    %128 = vector.broadcast %127 : vector<2x8x1xf32> to vector<2x8x8xf32>
    %129 = arith.mulf %124, %128 : vector<2x8x8xf32>
    %130 = arith.truncf %129 : vector<2x8x8xf32> to vector<2x8x8xbf16>
    %131 = vector.extract_strided_slice %48 {offsets = [0, 0, 48], sizes = [2, 8, 16], strides = [1, 1, 1]} : vector<2x8x64xbf16> to vector<2x8x16xbf16>
    "tpu.trace_start"() <{level = 10 : i32, message = "bqk,bkd->bqd"}> : () -> ()
    %cst_33 = arith.constant dense<0.000000e+00> : vector<2x8x16xf32>
    %132 = tpu.matmul %130, %131, %cst_33 {dimension_numbers = #tpu.dot_dimension_numbers<[2], [1], [1], [2], [0, 0, 0, 1, 1, 2], [0], [0]>} : vector<2x8x8xbf16>, vector<2x8x16xbf16>, vector<2x8x16xf32> -> vector<2x8x16xf32>
    "tpu.trace_stop"() : () -> ()
    %133 = tpu.concatenate %75, %94, %113, %132 in 2 : vector<2x8x16xf32>, vector<2x8x16xf32>, vector<2x8x16xf32>, vector<2x8x16xf32> -> vector<2x8x64xf32>
    %134 = vector.shape_cast %133 : vector<2x8x64xf32> to vector<16x64xf32>
    %135 = arith.truncf %134 : vector<16x64xf32> to vector<16x64xbf16>
    %cst_34 = arith.constant dense<0.000000e+00> : vector<16x64xf32>
    %136 = tpu.matmul %135, %28, %cst_34 {dimension_numbers = #tpu.dot_dimension_numbers<[1], [0], [0], [1], [0, 0, 1, 1], [], []>} : vector<16x64xbf16>, vector<64x64xbf16>, vector<16x64xf32> -> vector<16x64xf32>
    %137 = arith.addf %8, %136 : vector<16x64xf32>
    %138 = arith.mulf %137, %137 : vector<16x64xf32>
    %cst_35 = arith.constant dense<0.000000e+00> : vector<16xf32>
    %139 = vector.multi_reduction <add>, %138, %cst_35 [1] : vector<16x64xf32> to vector<16xf32>
    %140 = vector.shape_cast %139 : vector<16xf32> to vector<16x1xf32>
    %cst_36 = arith.constant 6.400000e+01 : f32
    %141 = vector.broadcast %cst_36 : f32 to vector<16x1xf32>
    %142 = arith.divf %140, %141 : vector<16x1xf32>
    %cst_37 = arith.constant 9.99999974E-6 : f32
    %143 = vector.broadcast %cst_37 : f32 to vector<16x1xf32>
    %144 = arith.addf %142, %143 : vector<16x1xf32>
    %145 = math.rsqrt %144 : vector<16x1xf32>
    %146 = vector.broadcast %145 : vector<16x1xf32> to vector<16x64xf32>
    %147 = arith.mulf %137, %146 : vector<16x64xf32>
    %148 = arith.truncf %147 : vector<16x64xf32> to vector<16x64xbf16>
    %cst_38 = arith.constant dense<0.000000e+00> : vector<16x256xf32>
    %149 = tpu.matmul %148, %26, %cst_38 {dimension_numbers = #tpu.dot_dimension_numbers<[1], [0], [0], [1], [0, 0, 1, 1], [], []>} : vector<16x64xbf16>, vector<64x256xbf16>, vector<16x256xf32> -> vector<16x256xf32>
    %150 = vector.extract_strided_slice %149 {offsets = [0, 0], sizes = [16, 128], strides = [1, 1]} : vector<16x256xf32> to vector<16x128xf32>
    %151 = vector.extract_strided_slice %149 {offsets = [0, 128], sizes = [16, 128], strides = [1, 1]} : vector<16x256xf32> to vector<16x128xf32>
    %152 = arith.negf %150 : vector<16x128xf32>
    %153 = math.exp %152 : vector<16x128xf32>
    %cst_39 = arith.constant 1.000000e+00 : f32
    %154 = vector.broadcast %cst_39 : f32 to vector<16x128xf32>
    %155 = arith.addf %154, %153 : vector<16x128xf32>
    %156 = arith.divf %154, %155 : vector<16x128xf32>
    %157 = arith.mulf %150, %156 : vector<16x128xf32>
    %158 = arith.mulf %157, %151 : vector<16x128xf32>
    %159 = arith.truncf %158 : vector<16x128xf32> to vector<16x128xbf16>
    %cst_40 = arith.constant dense<0.000000e+00> : vector<16x64xf32>
    %160 = tpu.matmul %159, %29, %cst_40 {dimension_numbers = #tpu.dot_dimension_numbers<[1], [0], [0], [1], [0, 0, 1, 1], [], []>} : vector<16x128xbf16>, vector<128x64xbf16>, vector<16x64xf32> -> vector<16x64xf32>
    %161 = arith.addf %137, %160 : vector<16x64xf32>
    %c1 = arith.constant 1 : index
    %c0_41 = arith.constant 0 : index
    %c0_42 = arith.constant 0 : index
    %162 = vector.load %arg3[%c1, %c0_41, %c0_42] : memref<2x64x576xbf16, #tpu.memory_space<vmem>>, vector<1x64x576xbf16>
    %163 = vector.shape_cast %162 : vector<1x64x576xbf16> to vector<64x576xbf16>
    %c1_43 = arith.constant 1 : index
    %c0_44 = arith.constant 0 : index
    %c0_45 = arith.constant 0 : index
    %164 = vector.load %arg4[%c1_43, %c0_44, %c0_45] : memref<2x192x64xbf16, #tpu.memory_space<vmem>>, vector<1x192x64xbf16>
    %165 = vector.shape_cast %164 : vector<1x192x64xbf16> to vector<192x64xbf16>
    %166 = vector.extract_strided_slice %163 {offsets = [0, 0], sizes = [64, 256], strides = [1, 1]} : vector<64x576xbf16> to vector<64x256xbf16>
    %167 = vector.extract_strided_slice %163 {offsets = [0, 256], sizes = [64, 320], strides = [1, 1]} : vector<64x576xbf16> to vector<64x320xbf16>
    %168 = vector.extract_strided_slice %165 {offsets = [0, 0], sizes = [64, 64], strides = [1, 1]} : vector<192x64xbf16> to vector<64x64xbf16>
    %169 = vector.extract_strided_slice %165 {offsets = [64, 0], sizes = [128, 64], strides = [1, 1]} : vector<192x64xbf16> to vector<128x64xbf16>
    %170 = arith.mulf %161, %161 : vector<16x64xf32>
    %cst_46 = arith.constant dense<0.000000e+00> : vector<16xf32>
    %171 = vector.multi_reduction <add>, %170, %cst_46 [1] : vector<16x64xf32> to vector<16xf32>
    %172 = vector.shape_cast %171 : vector<16xf32> to vector<16x1xf32>
    %cst_47 = arith.constant 6.400000e+01 : f32
    %173 = vector.broadcast %cst_47 : f32 to vector<16x1xf32>
    %174 = arith.divf %172, %173 : vector<16x1xf32>
    %cst_48 = arith.constant 9.99999974E-6 : f32
    %175 = vector.broadcast %cst_48 : f32 to vector<16x1xf32>
    %176 = arith.addf %174, %175 : vector<16x1xf32>
    %177 = math.rsqrt %176 : vector<16x1xf32>
    %178 = vector.broadcast %177 : vector<16x1xf32> to vector<16x64xf32>
    %179 = arith.mulf %161, %178 : vector<16x64xf32>
    %180 = arith.truncf %179 : vector<16x64xf32> to vector<16x64xbf16>
    %cst_49 = arith.constant dense<0.000000e+00> : vector<16x320xf32>
    %181 = tpu.matmul %180, %167, %cst_49 {dimension_numbers = #tpu.dot_dimension_numbers<[1], [0], [0], [1], [0, 0, 1, 1], [], []>} : vector<16x64xbf16>, vector<64x320xbf16>, vector<16x320xf32> -> vector<16x320xf32>
    %182 = vector.extract_strided_slice %181 {offsets = [0, 0], sizes = [16, 128], strides = [1, 1]} : vector<16x320xf32> to vector<16x128xf32>
    %183 = vector.shape_cast %182 : vector<16x128xf32> to vector<2x8x128xf32>
    %184 = vector.extract_strided_slice %181 {offsets = [0, 128], sizes = [16, 128], strides = [1, 1]} : vector<16x320xf32> to vector<16x128xf32>
    %185 = vector.shape_cast %184 : vector<16x128xf32> to vector<2x8x128xf32>
    %186 = vector.extract_strided_slice %181 {offsets = [0, 256], sizes = [16, 64], strides = [1, 1]} : vector<16x320xf32> to vector<16x64xf32>
    %187 = vector.shape_cast %186 : vector<16x64xf32> to vector<2x8x64xf32>
    %188 = arith.truncf %187 : vector<2x8x64xf32> to vector<2x8x64xbf16>
    %189 = vector.broadcast %18 : vector<1x8x128xf32> to vector<2x8x128xf32>
    %190 = arith.mulf %183, %189 : vector<2x8x128xf32>
    %191 = vector.broadcast %21 : vector<1x8x128xf32> to vector<2x8x128xf32>
    %192 = arith.mulf %185, %191 : vector<2x8x128xf32>
    %193 = arith.addf %190, %192 : vector<2x8x128xf32>
    %194 = arith.truncf %193 : vector<2x8x128xf32> to vector<2x8x128xbf16>
    %195 = vector.extract_strided_slice %194 {offsets = [0, 0, 0], sizes = [2, 8, 64], strides = [1, 1, 1]} : vector<2x8x128xbf16> to vector<2x8x64xbf16>
    %196 = vector.extract_strided_slice %194 {offsets = [0, 0, 64], sizes = [2, 8, 64], strides = [1, 1, 1]} : vector<2x8x128xbf16> to vector<2x8x64xbf16>
    %197 = vector.extract_strided_slice %195 {offsets = [0, 0, 0], sizes = [2, 8, 16], strides = [1, 1, 1]} : vector<2x8x64xbf16> to vector<2x8x16xbf16>
    %198 = vector.extract_strided_slice %196 {offsets = [0, 0, 0], sizes = [2, 8, 16], strides = [1, 1, 1]} : vector<2x8x64xbf16> to vector<2x8x16xbf16>
    "tpu.trace_start"() <{level = 10 : i32, message = "bqd,bkd->bqk"}> : () -> ()
    %cst_50 = arith.constant dense<0.000000e+00> : vector<2x8x8xf32>
    %199 = tpu.matmul %197, %198, %cst_50 {dimension_numbers = #tpu.dot_dimension_numbers<[2], [2], [1], [1], [0, 0, 0, 1, 1, 1], [0], [0]>} : vector<2x8x16xbf16>, vector<2x8x16xbf16>, vector<2x8x8xf32> -> vector<2x8x8xf32>
    "tpu.trace_stop"() : () -> ()
    %200 = vector.shape_cast %14 : vector<8x8xf32> to vector<1x8x8xf32>
    %201 = vector.broadcast %200 : vector<1x8x8xf32> to vector<2x8x8xf32>
    %202 = arith.addf %199, %201 : vector<2x8x8xf32>
    %cst_51 = arith.constant dense<0xFF800000> : vector<2x8xf32>
    %203 = vector.multi_reduction <maximumf>, %202, %cst_51 [2] : vector<2x8x8xf32> to vector<2x8xf32>
    %204 = vector.shape_cast %203 : vector<2x8xf32> to vector<2x8x1xf32>
    %205 = vector.broadcast %204 : vector<2x8x1xf32> to vector<2x8x8xf32>
    %206 = arith.subf %202, %205 : vector<2x8x8xf32>
    %207 = math.exp %206 : vector<2x8x8xf32>
    %cst_52 = arith.constant dense<0.000000e+00> : vector<2x8xf32>
    %208 = vector.multi_reduction <add>, %207, %cst_52 [2] : vector<2x8x8xf32> to vector<2x8xf32>
    %209 = vector.shape_cast %208 : vector<2x8xf32> to vector<2x8x1xf32>
    %210 = tpu.reciprocal %209 {approx = true} : vector<2x8x1xf32> -> vector<2x8x1xf32>
    %211 = vector.broadcast %210 : vector<2x8x1xf32> to vector<2x8x8xf32>
    %212 = arith.mulf %207, %211 : vector<2x8x8xf32>
    %213 = arith.truncf %212 : vector<2x8x8xf32> to vector<2x8x8xbf16>
    %214 = vector.extract_strided_slice %188 {offsets = [0, 0, 0], sizes = [2, 8, 16], strides = [1, 1, 1]} : vector<2x8x64xbf16> to vector<2x8x16xbf16>
    "tpu.trace_start"() <{level = 10 : i32, message = "bqk,bkd->bqd"}> : () -> ()
    %cst_53 = arith.constant dense<0.000000e+00> : vector<2x8x16xf32>
    %215 = tpu.matmul %213, %214, %cst_53 {dimension_numbers = #tpu.dot_dimension_numbers<[2], [1], [1], [2], [0, 0, 0, 1, 1, 2], [0], [0]>} : vector<2x8x8xbf16>, vector<2x8x16xbf16>, vector<2x8x16xf32> -> vector<2x8x16xf32>
    "tpu.trace_stop"() : () -> ()
    %216 = vector.extract_strided_slice %195 {offsets = [0, 0, 16], sizes = [2, 8, 16], strides = [1, 1, 1]} : vector<2x8x64xbf16> to vector<2x8x16xbf16>
    %217 = vector.extract_strided_slice %196 {offsets = [0, 0, 16], sizes = [2, 8, 16], strides = [1, 1, 1]} : vector<2x8x64xbf16> to vector<2x8x16xbf16>
    "tpu.trace_start"() <{level = 10 : i32, message = "bqd,bkd->bqk"}> : () -> ()
    %cst_54 = arith.constant dense<0.000000e+00> : vector<2x8x8xf32>
    %218 = tpu.matmul %216, %217, %cst_54 {dimension_numbers = #tpu.dot_dimension_numbers<[2], [2], [1], [1], [0, 0, 0, 1, 1, 1], [0], [0]>} : vector<2x8x16xbf16>, vector<2x8x16xbf16>, vector<2x8x8xf32> -> vector<2x8x8xf32>
    "tpu.trace_stop"() : () -> ()
    %219 = vector.shape_cast %14 : vector<8x8xf32> to vector<1x8x8xf32>
    %220 = vector.broadcast %219 : vector<1x8x8xf32> to vector<2x8x8xf32>
    %221 = arith.addf %218, %220 : vector<2x8x8xf32>
    %cst_55 = arith.constant dense<0xFF800000> : vector<2x8xf32>
    %222 = vector.multi_reduction <maximumf>, %221, %cst_55 [2] : vector<2x8x8xf32> to vector<2x8xf32>
    %223 = vector.shape_cast %222 : vector<2x8xf32> to vector<2x8x1xf32>
    %224 = vector.broadcast %223 : vector<2x8x1xf32> to vector<2x8x8xf32>
    %225 = arith.subf %221, %224 : vector<2x8x8xf32>
    %226 = math.exp %225 : vector<2x8x8xf32>
    %cst_56 = arith.constant dense<0.000000e+00> : vector<2x8xf32>
    %227 = vector.multi_reduction <add>, %226, %cst_56 [2] : vector<2x8x8xf32> to vector<2x8xf32>
    %228 = vector.shape_cast %227 : vector<2x8xf32> to vector<2x8x1xf32>
    %229 = tpu.reciprocal %228 {approx = true} : vector<2x8x1xf32> -> vector<2x8x1xf32>
    %230 = vector.broadcast %229 : vector<2x8x1xf32> to vector<2x8x8xf32>
    %231 = arith.mulf %226, %230 : vector<2x8x8xf32>
    %232 = arith.truncf %231 : vector<2x8x8xf32> to vector<2x8x8xbf16>
    %233 = vector.extract_strided_slice %188 {offsets = [0, 0, 16], sizes = [2, 8, 16], strides = [1, 1, 1]} : vector<2x8x64xbf16> to vector<2x8x16xbf16>
    "tpu.trace_start"() <{level = 10 : i32, message = "bqk,bkd->bqd"}> : () -> ()
    %cst_57 = arith.constant dense<0.000000e+00> : vector<2x8x16xf32>
    %234 = tpu.matmul %232, %233, %cst_57 {dimension_numbers = #tpu.dot_dimension_numbers<[2], [1], [1], [2], [0, 0, 0, 1, 1, 2], [0], [0]>} : vector<2x8x8xbf16>, vector<2x8x16xbf16>, vector<2x8x16xf32> -> vector<2x8x16xf32>
    "tpu.trace_stop"() : () -> ()
    %235 = vector.extract_strided_slice %195 {offsets = [0, 0, 32], sizes = [2, 8, 16], strides = [1, 1, 1]} : vector<2x8x64xbf16> to vector<2x8x16xbf16>
    %236 = vector.extract_strided_slice %196 {offsets = [0, 0, 32], sizes = [2, 8, 16], strides = [1, 1, 1]} : vector<2x8x64xbf16> to vector<2x8x16xbf16>
    "tpu.trace_start"() <{level = 10 : i32, message = "bqd,bkd->bqk"}> : () -> ()
    %cst_58 = arith.constant dense<0.000000e+00> : vector<2x8x8xf32>
    %237 = tpu.matmul %235, %236, %cst_58 {dimension_numbers = #tpu.dot_dimension_numbers<[2], [2], [1], [1], [0, 0, 0, 1, 1, 1], [0], [0]>} : vector<2x8x16xbf16>, vector<2x8x16xbf16>, vector<2x8x8xf32> -> vector<2x8x8xf32>
    "tpu.trace_stop"() : () -> ()
    %238 = vector.shape_cast %14 : vector<8x8xf32> to vector<1x8x8xf32>
    %239 = vector.broadcast %238 : vector<1x8x8xf32> to vector<2x8x8xf32>
    %240 = arith.addf %237, %239 : vector<2x8x8xf32>
    %cst_59 = arith.constant dense<0xFF800000> : vector<2x8xf32>
    %241 = vector.multi_reduction <maximumf>, %240, %cst_59 [2] : vector<2x8x8xf32> to vector<2x8xf32>
    %242 = vector.shape_cast %241 : vector<2x8xf32> to vector<2x8x1xf32>
    %243 = vector.broadcast %242 : vector<2x8x1xf32> to vector<2x8x8xf32>
    %244 = arith.subf %240, %243 : vector<2x8x8xf32>
    %245 = math.exp %244 : vector<2x8x8xf32>
    %cst_60 = arith.constant dense<0.000000e+00> : vector<2x8xf32>
    %246 = vector.multi_reduction <add>, %245, %cst_60 [2] : vector<2x8x8xf32> to vector<2x8xf32>
    %247 = vector.shape_cast %246 : vector<2x8xf32> to vector<2x8x1xf32>
    %248 = tpu.reciprocal %247 {approx = true} : vector<2x8x1xf32> -> vector<2x8x1xf32>
    %249 = vector.broadcast %248 : vector<2x8x1xf32> to vector<2x8x8xf32>
    %250 = arith.mulf %245, %249 : vector<2x8x8xf32>
    %251 = arith.truncf %250 : vector<2x8x8xf32> to vector<2x8x8xbf16>
    %252 = vector.extract_strided_slice %188 {offsets = [0, 0, 32], sizes = [2, 8, 16], strides = [1, 1, 1]} : vector<2x8x64xbf16> to vector<2x8x16xbf16>
    "tpu.trace_start"() <{level = 10 : i32, message = "bqk,bkd->bqd"}> : () -> ()
    %cst_61 = arith.constant dense<0.000000e+00> : vector<2x8x16xf32>
    %253 = tpu.matmul %251, %252, %cst_61 {dimension_numbers = #tpu.dot_dimension_numbers<[2], [1], [1], [2], [0, 0, 0, 1, 1, 2], [0], [0]>} : vector<2x8x8xbf16>, vector<2x8x16xbf16>, vector<2x8x16xf32> -> vector<2x8x16xf32>
    "tpu.trace_stop"() : () -> ()
    %254 = vector.extract_strided_slice %195 {offsets = [0, 0, 48], sizes = [2, 8, 16], strides = [1, 1, 1]} : vector<2x8x64xbf16> to vector<2x8x16xbf16>
    %255 = vector.extract_strided_slice %196 {offsets = [0, 0, 48], sizes = [2, 8, 16], strides = [1, 1, 1]} : vector<2x8x64xbf16> to vector<2x8x16xbf16>
    "tpu.trace_start"() <{level = 10 : i32, message = "bqd,bkd->bqk"}> : () -> ()
    %cst_62 = arith.constant dense<0.000000e+00> : vector<2x8x8xf32>
    %256 = tpu.matmul %254, %255, %cst_62 {dimension_numbers = #tpu.dot_dimension_numbers<[2], [2], [1], [1], [0, 0, 0, 1, 1, 1], [0], [0]>} : vector<2x8x16xbf16>, vector<2x8x16xbf16>, vector<2x8x8xf32> -> vector<2x8x8xf32>
    "tpu.trace_stop"() : () -> ()
    %257 = vector.shape_cast %14 : vector<8x8xf32> to vector<1x8x8xf32>
    %258 = vector.broadcast %257 : vector<1x8x8xf32> to vector<2x8x8xf32>
    %259 = arith.addf %256, %258 : vector<2x8x8xf32>
    %cst_63 = arith.constant dense<0xFF800000> : vector<2x8xf32>
    %260 = vector.multi_reduction <maximumf>, %259, %cst_63 [2] : vector<2x8x8xf32> to vector<2x8xf32>
    %261 = vector.shape_cast %260 : vector<2x8xf32> to vector<2x8x1xf32>
    %262 = vector.broadcast %261 : vector<2x8x1xf32> to vector<2x8x8xf32>
    %263 = arith.subf %259, %262 : vector<2x8x8xf32>
    %264 = math.exp %263 : vector<2x8x8xf32>
    %cst_64 = arith.constant dense<0.000000e+00> : vector<2x8xf32>
    %265 = vector.multi_reduction <add>, %264, %cst_64 [2] : vector<2x8x8xf32> to vector<2x8xf32>
    %266 = vector.shape_cast %265 : vector<2x8xf32> to vector<2x8x1xf32>
    %267 = tpu.reciprocal %266 {approx = true} : vector<2x8x1xf32> -> vector<2x8x1xf32>
    %268 = vector.broadcast %267 : vector<2x8x1xf32> to vector<2x8x8xf32>
    %269 = arith.mulf %264, %268 : vector<2x8x8xf32>
    %270 = arith.truncf %269 : vector<2x8x8xf32> to vector<2x8x8xbf16>
    %271 = vector.extract_strided_slice %188 {offsets = [0, 0, 48], sizes = [2, 8, 16], strides = [1, 1, 1]} : vector<2x8x64xbf16> to vector<2x8x16xbf16>
    "tpu.trace_start"() <{level = 10 : i32, message = "bqk,bkd->bqd"}> : () -> ()
    %cst_65 = arith.constant dense<0.000000e+00> : vector<2x8x16xf32>
    %272 = tpu.matmul %270, %271, %cst_65 {dimension_numbers = #tpu.dot_dimension_numbers<[2], [1], [1], [2], [0, 0, 0, 1, 1, 2], [0], [0]>} : vector<2x8x8xbf16>, vector<2x8x16xbf16>, vector<2x8x16xf32> -> vector<2x8x16xf32>
    "tpu.trace_stop"() : () -> ()
    %273 = tpu.concatenate %215, %234, %253, %272 in 2 : vector<2x8x16xf32>, vector<2x8x16xf32>, vector<2x8x16xf32>, vector<2x8x16xf32> -> vector<2x8x64xf32>
    %274 = vector.shape_cast %273 : vector<2x8x64xf32> to vector<16x64xf32>
    %275 = arith.truncf %274 : vector<16x64xf32> to vector<16x64xbf16>
    %cst_66 = arith.constant dense<0.000000e+00> : vector<16x64xf32>
    %276 = tpu.matmul %275, %168, %cst_66 {dimension_numbers = #tpu.dot_dimension_numbers<[1], [0], [0], [1], [0, 0, 1, 1], [], []>} : vector<16x64xbf16>, vector<64x64xbf16>, vector<16x64xf32> -> vector<16x64xf32>
    %277 = arith.addf %161, %276 : vector<16x64xf32>
    %278 = arith.mulf %277, %277 : vector<16x64xf32>
    %cst_67 = arith.constant dense<0.000000e+00> : vector<16xf32>
    %279 = vector.multi_reduction <add>, %278, %cst_67 [1] : vector<16x64xf32> to vector<16xf32>
    %280 = vector.shape_cast %279 : vector<16xf32> to vector<16x1xf32>
    %cst_68 = arith.constant 6.400000e+01 : f32
    %281 = vector.broadcast %cst_68 : f32 to vector<16x1xf32>
    %282 = arith.divf %280, %281 : vector<16x1xf32>
    %cst_69 = arith.constant 9.99999974E-6 : f32
    %283 = vector.broadcast %cst_69 : f32 to vector<16x1xf32>
    %284 = arith.addf %282, %283 : vector<16x1xf32>
    %285 = math.rsqrt %284 : vector<16x1xf32>
    %286 = vector.broadcast %285 : vector<16x1xf32> to vector<16x64xf32>
    %287 = arith.mulf %277, %286 : vector<16x64xf32>
    %288 = arith.truncf %287 : vector<16x64xf32> to vector<16x64xbf16>
    %cst_70 = arith.constant dense<0.000000e+00> : vector<16x256xf32>
    %289 = tpu.matmul %288, %166, %cst_70 {dimension_numbers = #tpu.dot_dimension_numbers<[1], [0], [0], [1], [0, 0, 1, 1], [], []>} : vector<16x64xbf16>, vector<64x256xbf16>, vector<16x256xf32> -> vector<16x256xf32>
    %290 = vector.extract_strided_slice %289 {offsets = [0, 0], sizes = [16, 128], strides = [1, 1]} : vector<16x256xf32> to vector<16x128xf32>
    %291 = vector.extract_strided_slice %289 {offsets = [0, 128], sizes = [16, 128], strides = [1, 1]} : vector<16x256xf32> to vector<16x128xf32>
    %292 = arith.negf %290 : vector<16x128xf32>
    %293 = math.exp %292 : vector<16x128xf32>
    %cst_71 = arith.constant 1.000000e+00 : f32
    %294 = vector.broadcast %cst_71 : f32 to vector<16x128xf32>
    %295 = arith.addf %294, %293 : vector<16x128xf32>
    %296 = arith.divf %294, %295 : vector<16x128xf32>
    %297 = arith.mulf %290, %296 : vector<16x128xf32>
    %298 = arith.mulf %297, %291 : vector<16x128xf32>
    %299 = arith.truncf %298 : vector<16x128xf32> to vector<16x128xbf16>
    %cst_72 = arith.constant dense<0.000000e+00> : vector<16x64xf32>
    %300 = tpu.matmul %299, %169, %cst_72 {dimension_numbers = #tpu.dot_dimension_numbers<[1], [0], [0], [1], [0, 0, 1, 1], [], []>} : vector<16x128xbf16>, vector<128x64xbf16>, vector<16x64xf32> -> vector<16x64xf32>
    %301 = arith.addf %277, %300 : vector<16x64xf32>
    %302 = vector.shape_cast %301 : vector<16x64xf32> to vector<2x8x64xf32>
    %303 = vector.extract_strided_slice %302 {offsets = [0, 7, 0], sizes = [2, 1, 64], strides = [1, 1, 1]} : vector<2x8x64xf32> to vector<2x1x64xf32>
    %304 = vector.shape_cast %303 : vector<2x1x64xf32> to vector<2x64xf32>
    %305 = arith.mulf %304, %304 : vector<2x64xf32>
    %cst_73 = arith.constant dense<0.000000e+00> : vector<2xf32>
    %306 = vector.multi_reduction <add>, %305, %cst_73 [1] : vector<2x64xf32> to vector<2xf32>
    %307 = vector.shape_cast %306 : vector<2xf32> to vector<2x1xf32>
    %cst_74 = arith.constant 6.400000e+01 : f32
    %308 = vector.broadcast %cst_74 : f32 to vector<2x1xf32>
    %309 = arith.divf %307, %308 : vector<2x1xf32>
    %cst_75 = arith.constant 9.99999974E-6 : f32
    %310 = vector.broadcast %cst_75 : f32 to vector<2x1xf32>
    %311 = arith.addf %309, %310 : vector<2x1xf32>
    %312 = math.rsqrt %311 : vector<2x1xf32>
    %313 = vector.broadcast %312 : vector<2x1xf32> to vector<2x64xf32>
    %314 = arith.mulf %304, %313 : vector<2x64xf32>
    %c0_76 = arith.constant 0 : index
    %c0_77 = arith.constant 0 : index
    %315 = vector.load %arg6[%c0_76, %c0_77] : memref<64x256xbf16, #tpu.memory_space<vmem>>, vector<64x256xbf16>
    %316 = arith.truncf %314 : vector<2x64xf32> to vector<2x64xbf16>
    %cst_78 = arith.constant dense<0.000000e+00> : vector<2x256xf32>
    %317 = tpu.matmul %316, %315, %cst_78 {dimension_numbers = #tpu.dot_dimension_numbers<[1], [0], [0], [1], [0, 0, 1, 1], [], []>} : vector<2x64xbf16>, vector<64x256xbf16>, vector<2x256xf32> -> vector<2x256xf32>
    %c0_79 = arith.constant 0 : index
    %c0_80 = arith.constant 0 : index
    %318 = vector.load %arg7[%c0_79, %c0_80] : memref<2x256xf32, #tpu.memory_space<vmem>>, vector<2x256xf32>
    tpu.vector_store %arg7[%c0_79, %c0_80], %317 {strides = array<i32>} : memref<2x256xf32, #tpu.memory_space<vmem>>, vector<2x256xf32>,
    return
  }
  func.func @transform_0(%arg0: i32) -> (i32, i32) {
    %c0_i32 = arith.constant 0 : i32
    %c0_i32_0 = arith.constant 0 : i32
    %c0_i32_1 = arith.constant 0 : i32
    return %c0_i32, %c0_i32_0 : i32, i32
  }
  func.func @transform_1(%arg0: i32) -> (i32, i32) {
    %c0_i32 = arith.constant 0 : i32
    %c0_i32_0 = arith.constant 0 : i32
    %c0_i32_1 = arith.constant 0 : i32
    return %c0_i32, %c0_i32_0 : i32, i32
  }
  func.func @transform_2(%arg0: i32) -> (i32, i32, i32) {
    %c0_i32 = arith.constant 0 : i32
    %c0_i32_0 = arith.constant 0 : i32
    %c0_i32_1 = arith.constant 0 : i32
    %c0_i32_2 = arith.constant 0 : i32
    return %c0_i32, %c0_i32_0, %c0_i32_1 : i32, i32, i32
  }
  func.func @transform_3(%arg0: i32) -> (i32, i32, i32) {
    %c0_i32 = arith.constant 0 : i32
    %c0_i32_0 = arith.constant 0 : i32
    %c0_i32_1 = arith.constant 0 : i32
    %c0_i32_2 = arith.constant 0 : i32
    return %c0_i32, %c0_i32_0, %c0_i32_1 : i32, i32, i32
  }
  func.func @transform_4(%arg0: i32) -> (i32, i32, i32) {
    %c0_i32 = arith.constant 0 : i32
    %c0_i32_0 = arith.constant 0 : i32
    %c0_i32_1 = arith.constant 0 : i32
    %c0_i32_2 = arith.constant 0 : i32
    return %c0_i32, %c0_i32_0, %c0_i32_1 : i32, i32, i32
  }
  func.func @transform_5(%arg0: i32) -> (i32, i32) {
    %c0_i32 = arith.constant 0 : i32
    %c0_i32_0 = arith.constant 0 : i32
    %c0_i32_1 = arith.constant 0 : i32
    return %c0_i32, %c0_i32_0 : i32, i32
  }
  func.func @transform_6(%arg0: i32) -> (i32, i32) {
    %c0_i32 = arith.constant 0 : i32
    %c0_i32_0 = arith.constant 0 : i32
    %c0_i32_1 = arith.constant 0 : i32
    return %c0_i32, %c0_i32_0 : i32, i32
  }
}

</mosaic_0001>

<llo_original>
// kernel: forward.1
$region0: #{forward.1}
  #allocation0 [shape = 'u32[]', space=smem, size = 0x4, offset = 0x4, fixed_abs, tag = 'smem constant byte address 0x4 - core index']
  #allocation1 [shape = 'u32[72,128]{1,0:T(1,128)}', space=vmem, size = 0x9000, scoped, tag = 'internal scratch']
  %s0 = inlined_call_operand.vmem [shape: s32[16,1], index: 0, kind: input, shape index: {}]
  %s1 = inlined_call_operand.vmem [shape: bf16[256,64], index: 1, kind: input, shape index: {}]
  %s2 = inlined_call_operand.vmem [shape: bf16[2,64,576], index: 2, kind: input, shape index: {}]
  %s3 = inlined_call_operand.vmem [shape: bf16[2,192,64], index: 3, kind: input, shape index: {}]
  %s4 = inlined_call_operand.hbm [shape: f32[2,16,128], index: 4, kind: input, shape index: {}]
  %s5 = inlined_call_operand.vmem [shape: bf16[64,256], index: 5, kind: input, shape index: {}]
  %s6 = inlined_call_operand.vmem [shape: f32[2,256], index: 6, kind: output, shape index: {}]
  %s7 = sld [smem:[#allocation0]]
  $region38: #{forward.1} parent=0
    _
  %s9 = ssub.s32 1, %s7
  %s10 = scalar_select 0, %s9, %s7
  $region1: #{forward.1} parent=0
    #allocation2 [shape = 'u8[16384]{0}', space=vmem, size = 0x4000, scoped, tag = 'input window, operand 4, single buffered']
    #allocation3 [shape = 's32[1]{0}', space=sflag, size = 0x4, scoped, tag = 'scoped memory for forward.1']
    %11 = vsyncpa [#allocation3], 0
    // Predicated region
    $region2: #{forward.1} parent=1 // pred_check
      _
    $region3: #{forward.1} parent=1 // pred_check_branch
      %13 = sbr.rel (0) target = $region5
    $region4: #{forward.1} parent=1 // pred_region
      _
    $region5: #{forward.1} parent=1 // pred_fallthru
      _
    // Predicated region
    $region6: #{forward.1} parent=1 // pred_check
      _
    $region7: #{forward.1} parent=1 // pred_check_branch
      %15 = sbr.rel (0) target = $region9
    $region8: #{forward.1} parent=1 // pred_region
      _
    $region9: #{forward.1} parent=1 // pred_fallthru
      _
    // Predicated region
    $region10: #{forward.1} parent=1 // pred_check
      _
    $region11: #{forward.1} parent=1 // pred_check_branch
      %17 = sbr.rel (0) target = $region13
    $region12: #{forward.1} parent=1 // pred_region
      _
    $region13: #{forward.1} parent=1 // pred_fallthru
      _
    // Predicated region
    $region14: #{forward.1} parent=1 // pred_check
      _
    $region15: #{forward.1} parent=1 // pred_check_branch
      %19 = sbr.rel (0) target = $region17
    $region16: #{forward.1} parent=1 // pred_region
      _
    $region17: #{forward.1} parent=1 // pred_fallthru
      _
    // Predicated region
    $region18: #{forward.1} parent=1 // pred_check
      _
    $region19: #{forward.1} parent=1 // pred_check_branch
      %21 = sbr.rel (0) target = $region21
    $region20: #{forward.1} parent=1 // pred_region
      %23 = vsyncadd [#allocation3], 0
      %s24 = sshll.u32 %s4, 4
      %s25 = int_to_ptr.hbm [resolvable:$true] %s24
      %s26 = sshll.u32 [#allocation2], 4
      %s27 = int_to_ptr.vmem [resolvable:$true] %s26
      %32 = dma.hbm_to_vmem [thread:$0]  %s25, 512, %s27, [#allocation3], 128, 128, 8
    $region21: #{forward.1} parent=1 // pred_fallthru
      _
    // Predicated region
    $region22: #{forward.1} parent=1 // pred_check
      _
    $region23: #{forward.1} parent=1 // pred_check_branch
      %34 = sbr.rel (0) target = $region25
    $region24: #{forward.1} parent=1 // pred_region
      _
    $region25: #{forward.1} parent=1 // pred_fallthru
      _
    // Predicated region
    $region26: #{forward.1} parent=1 // pred_check
      _
    $region27: #{forward.1} parent=1 // pred_check_branch
      %36 = sbr.rel (0) target = $region29
    $region28: #{forward.1} parent=1 // pred_region
      %38 = dma.done [#allocation3], 512
    $region29: #{forward.1} parent=1 // pred_fallthru
      _
    %v40 = vld [vmem:[%s0] sm:$0xff]
    %v41 = vld [vmem:[%s0 + $0x8] sm:$0xff]
    %v42 = vlaneseq
    %v43 = vand.u32 %v42, 127
    %v44 = vadd.s32 %v43, 128
    %45 = vset.pattern.permute.xlu0 0
    %46 = vperm.xlu0 %45, %v40
    %v47 = vpop.permute.xlu0 %46
    %48 = vset.pattern.permute.xlu0 0
    %49 = vperm.xlu0 %48, %v41
    %v50 = vpop.permute.xlu0 %49
    %vm51 = vcmp.eq.s32.totalorder %v43, %v47
    %vm52 = vcmp.eq.s32.totalorder %v44, %v47
    %vm53 = vcmp.eq.s32.totalorder %v43, %v50
    %vm54 = vcmp.eq.s32.totalorder %v44, %v50
    %v55 = vsel %vm51, 1, 0
    %v56 = vsel %vm52, 1, 0
    %v57 = vsel %vm53, 1, 0
    %v58 = vsel %vm54, 1, 0
    %v59 = vcvt.s32.f32 %v55
    %v60 = vcvt.s32.f32 %v56
    %v61 = vcvt.s32.f32 %v57
    %v62 = vcvt.s32.f32 %v58
    %v63 = vpack.c.bf16 %v61, %v59
    %v64 = vpack.c.bf16 %v62, %v60
    %v65 = vld [vmem:[%s1] sm:$0xf]
    %v66 = vld [vmem:[%s1 + $0x4] sm:$0xf]
    %v67 = vld [vmem:[%s1 + $0x8] sm:$0xf]
    %v68 = vld [vmem:[%s1 + $0xc] sm:$0xf]
    %v69 = vld [vmem:[%s1 + $0x10] sm:$0xf]
    %v70 = vld [vmem:[%s1 + $0x14] sm:$0xf]
    %v71 = vld [vmem:[%s1 + $0x18] sm:$0xf]
    %v72 = vld [vmem:[%s1 + $0x1c] sm:$0xf]
    %v73 = vld [vmem:[%s1 + $0x20] sm:$0xf]
    %v74 = vld [vmem:[%s1 + $0x24] sm:$0xf]
    %v75 = vld [vmem:[%s1 + $0x28] sm:$0xf]
    %v76 = vld [vmem:[%s1 + $0x2c] sm:$0xf]
    %v77 = vld [vmem:[%s1 + $0x30] sm:$0xf]
    %v78 = vld [vmem:[%s1 + $0x34] sm:$0xf]
    %v79 = vld [vmem:[%s1 + $0x38] sm:$0xf]
    %v80 = vld [vmem:[%s1 + $0x3c] sm:$0xf]
    %v81 = vld [vmem:[%s1 + $0x40] sm:$0xf]
    %v82 = vld [vmem:[%s1 + $0x44] sm:$0xf]
    %v83 = vld [vmem:[%s1 + $0x48] sm:$0xf]
    %v84 = vld [vmem:[%s1 + $0x4c] sm:$0xf]
    %v85 = vld [vmem:[%s1 + $0x50] sm:$0xf]
    %v86 = vld [vmem:[%s1 + $0x54] sm:$0xf]
    %v87 = vld [vmem:[%s1 + $0x58] sm:$0xf]
    %v88 = vld [vmem:[%s1 + $0x5c] sm:$0xf]
    %v89 = vld [vmem:[%s1 + $0x60] sm:$0xf]
    %v90 = vld [vmem:[%s1 + $0x64] sm:$0xf]
    %v91 = vld [vmem:[%s1 + $0x68] sm:$0xf]
    %v92 = vld [vmem:[%s1 + $0x6c] sm:$0xf]
    %v93 = vld [vmem:[%s1 + $0x70] sm:$0xf]
    %v94 = vld [vmem:[%s1 + $0x74] sm:$0xf]
    %v95 = vld [vmem:[%s1 + $0x78] sm:$0xf]
    %v96 = vld [vmem:[%s1 + $0x7c] sm:$0xf]
    %v129 = vunpack.c.l.b16 %v65
    %v130 = vunpack.c.l.b16 %v66
    %v131 = vunpack.c.l.b16 %v67
    %v132 = vunpack.c.l.b16 %v68
    %v133 = vunpack.c.l.b16 %v69
    %v134 = vunpack.c.l.b16 %v70
    %v135 = vunpack.c.l.b16 %v71
    %v136 = vunpack.c.l.b16 %v72
    %v137 = vunpack.c.l.b16 %v73
    %v138 = vunpack.c.l.b16 %v74
    %v139 = vunpack.c.l.b16 %v75
    %v140 = vunpack.c.l.b16 %v76
    %v141 = vunpack.c.l.b16 %v77
    %v142 = vunpack.c.l.b16 %v78
    %v143 = vunpack.c.l.b16 %v79
    %v144 = vunpack.c.l.b16 %v80
    %v145 = vunpack.c.l.b16 %v81
    %v146 = vunpack.c.l.b16 %v82
    %v147 = vunpack.c.l.b16 %v83
    %v148 = vunpack.c.l.b16 %v84
    %v149 = vunpack.c.l.b16 %v85
    %v150 = vunpack.c.l.b16 %v86
    %v151 = vunpack.c.l.b16 %v87
    %v152 = vunpack.c.l.b16 %v88
    %v153 = vunpack.c.l.b16 %v89
    %v154 = vunpack.c.l.b16 %v90
    %v155 = vunpack.c.l.b16 %v91
    %v156 = vunpack.c.l.b16 %v92
    %v157 = vunpack.c.l.b16 %v93
    %v158 = vunpack.c.l.b16 %v94
    %v159 = vunpack.c.l.b16 %v95
    %v160 = vunpack.c.l.b16 %v96
    %v161 = vpack.c.b16 %v130, %v129
    %v162 = vpack.c.b16 %v132, %v131
    %v163 = vpack.c.b16 %v134, %v133
    %v164 = vpack.c.b16 %v136, %v135
    %v165 = vpack.c.b16 %v138, %v137
    %v166 = vpack.c.b16 %v140, %v139
    %v167 = vpack.c.b16 %v142, %v141
    %v168 = vpack.c.b16 %v144, %v143
    %v169 = vpack.c.b16 %v146, %v145
    %v170 = vpack.c.b16 %v148, %v147
    %v171 = vpack.c.b16 %v150, %v149
    %v172 = vpack.c.b16 %v152, %v151
    %v173 = vpack.c.b16 %v154, %v153
    %v174 = vpack.c.b16 %v156, %v155
    %v175 = vpack.c.b16 %v158, %v157
    %v176 = vpack.c.b16 %v160, %v159
    %193 = vmatpush.bf16.msra.mxu0 %v168
    %194 = vmatpush.bf16.msra.mxu0 %v167
    %195 = vmatpush.bf16.msra.mxu0 %v166
    %196 = vmatpush.bf16.msra.mxu0 %v165
    %197 = vmatpush.bf16.msra.mxu0 %v164
    %198 = vmatpush.bf16.msra.mxu0 %v163
    %199 = vmatpush.bf16.msra.mxu0 %v162
    %200 = vmatpush.bf16.msra.mxu0 %v161
    %201 = vmatmul.bf16.gmra.mxu0 %v63
    %v202 = vpop.f32.mrf.mxu0
    %v203 = vadd.f32 0.0, %v202
    %v204 = vpop.f32.mrf.mxu0
    %v205 = vadd.f32 0.0, %v204
    %206 = vdwg.mxu0
    %207 = vmatpush.bf16.msra.mxu0 %v176
    %208 = vmatpush.bf16.msra.mxu0 %v175
    %209 = vmatpush.bf16.msra.mxu0 %v174
    %210 = vmatpush.bf16.msra.mxu0 %v173
    %211 = vmatpush.bf16.msra.mxu0 %v172
    %212 = vmatpush.bf16.msra.mxu0 %v171
    %213 = vmatpush.bf16.msra.mxu0 %v170
    %214 = vmatpush.bf16.msra.mxu0 %v169
    %215 = vmatmul.bf16.gmra.mxu0 %v64
    %v216 = vpop.f32.mrf.mxu0
    %v217 = vadd.f32 %v203, %v216
    %v218 = vpop.f32.mrf.mxu0
    %v219 = vadd.f32 %v205, %v218
    %220 = vdwg.mxu0
    %v221 = vlaneseq
    %v222 = vshrl.u32 %v221, 7
    %vm223 = vcmp.le.s32.totalorder %v43, %v222
    %v224 = vsel %vm223, 0.0, -1e+30
    %v225 = vld [vmem:[#allocation2] sm:$0xff]
    %v226 = vld [vmem:[#allocation2 + $0x10] sm:$0xff]
    %v227 = vld [vmem:[%s2] sm:$0xff]
    %v228 = vld [vmem:[%s2 + $0x8] sm:$0xff]
    %v229 = vld [vmem:[%s2 + $0x10] sm:$0xf]
    %v230 = vld [vmem:[%s2 + $0x14] sm:$0xff]
    %v231 = vld [vmem:[%s2 + $0x1c] sm:$0xff]
    %v232 = vld [vmem:[%s2 + $0x24] sm:$0xf]
    %v233 = vld [vmem:[%s2 + $0x28] sm:$0xff]
    %v234 = vld [vmem:[%s2 + $0x30] sm:$0xff]
    %v235 = vld [vmem:[%s2 + $0x38] sm:$0xf]
    %v236 = vld [vmem:[%s2 + $0x3c] sm:$0xff]
    %v237 = vld [vmem:[%s2 + $0x44] sm:$0xff]
    %v238 = vld [vmem:[%s2 + $0x4c] sm:$0xf]
    %v239 = vld [vmem:[%s2 + $0x50] sm:$0xff]
    %v240 = vld [vmem:[%s2 + $0x58] sm:$0xff]
    %v241 = vld [vmem:[%s2 + $0x60] sm:$0xf]
    %v242 = vld [vmem:[%s2 + $0x64] sm:$0xff]
    %v243 = vld [vmem:[%s2 + $0x6c] sm:$0xff]
    %v244 = vld [vmem:[%s2 + $0x74] sm:$0xf]
    %v245 = vld [vmem:[%s2 + $0x78] sm:$0xff]
    %v246 = vld [vmem:[%s2 + $0x80] sm:$0xff]
    %v247 = vld [vmem:[%s2 + $0x88] sm:$0xf]
    %v248 = vld [vmem:[%s2 + $0x8c] sm:$0xff]
    %v249 = vld [vmem:[%s2 + $0x94] sm:$0xff]
    %v250 = vld [vmem:[%s2 + $0x9c] sm:$0xf]
    %v251 = vld [vmem:[%s3] sm:$0xf]
    %v252 = vld [vmem:[%s3 + $0x4] sm:$0xf]
    %v253 = vld [vmem:[%s3 + $0x8] sm:$0xf]
    %v254 = vld [vmem:[%s3 + $0xc] sm:$0xf]
    %v255 = vld [vmem:[%s3 + $0x10] sm:$0xf]
    %v256 = vld [vmem:[%s3 + $0x14] sm:$0xf]
    %v257 = vld [vmem:[%s3 + $0x18] sm:$0xf]
    %v258 = vld [vmem:[%s3 + $0x1c] sm:$0xf]
    %v259 = vld [vmem:[%s3 + $0x20] sm:$0xf]
    %v260 = vld [vmem:[%s3 + $0x24] sm:$0xf]
    %v261 = vld [vmem:[%s3 + $0x28] sm:$0xf]
    %v262 = vld [vmem:[%s3 + $0x2c] sm:$0xf]
    %v263 = vld [vmem:[%s3 + $0x30] sm:$0xf]
    %v264 = vld [vmem:[%s3 + $0x34] sm:$0xf]
    %v265 = vld [vmem:[%s3 + $0x38] sm:$0xf]
    %v266 = vld [vmem:[%s3 + $0x3c] sm:$0xf]
    %v267 = vld [vmem:[%s3 + $0x40] sm:$0xf]
    %v268 = vld [vmem:[%s3 + $0x44] sm:$0xf]
    %v269 = vld [vmem:[%s3 + $0x48] sm:$0xf]
    %v270 = vld [vmem:[%s3 + $0x4c] sm:$0xf]
    %v271 = vld [vmem:[%s3 + $0x50] sm:$0xf]
    %v272 = vld [vmem:[%s3 + $0x54] sm:$0xf]
    %v273 = vld [vmem:[%s3 + $0x58] sm:$0xf]
    %v274 = vld [vmem:[%s3 + $0x5c] sm:$0xf]
    %v275 = vmul.f32 %v217, %v217
    %v276 = vmul.f32 %v219, %v219
    %vm277 = vcmask 523264
    %v278 = vsel %vm277, %v275, 0.0
    %279 = vadd.xlane.f32.xlu0 %v278
    %v280 = vpop.xlane.xlu0 %279
    %v281 = vsel %vm277, %v276, 0.0
    %282 = vadd.xlane.f32.xlu0 %v281
    %v283 = vpop.xlane.xlu0 %282
    %v284 = vrcp.pop 64.0
    %v285 = vmul.f32 64.0, %v284
    %v286 = vsub.f32 1.0, %v285
    %v287 = vmul.f32 %v284, %v286
    %v288 = vadd.f32 %v284, %v287
    %vm289 = vweird.f32 %v284
    %v290 = vsel %vm289, %v284, %v288
    %v291 = vmul.f32 %v280, %v290
    %v292 = vmul.f32 %v283, %v290
    %v293 = vadd.f32 %v291, 1e-05
    %v294 = vadd.f32 %v292, 1e-05
    %v295 = vrsqrt.pop %v293
    %v296 = vmul.f32 %v295, %v293
    %v297 = vmul.f32 %v296, %v295
    %v298 = vmul.f32 0.5, %v297
    %v299 = vsub.f32 1.5, %v298
    %v300 = vmul.f32 %v295, %v299
    %vm301 = vweird.f32 %v293
    %vm302 = vweird.f32 %v295
    %vm303 = vmor %vm301, %vm302
    %v304 = vsel %vm303, %v295, %v300
    %v305 = vrsqrt.pop %v294
    %v306 = vmul.f32 %v305, %v294
    %v307 = vmul.f32 %v306, %v305
    %v308 = vmul.f32 0.5, %v307
    %v309 = vsub.f32 1.5, %v308
    %v310 = vmul.f32 %v305, %v309
    %vm311 = vweird.f32 %v294
    %vm312 = vweird.f32 %v305
    %vm313 = vmor %vm311, %vm312
    %v314 = vsel %vm313, %v305, %v310
    %v315 = vmul.f32 %v217, %v304
    %v316 = vmul.f32 %v219, %v314
    %v317 = vpack.c.bf16 %v316, %v315
    %v334 = vunpack.c.l.b16 %v228
    %v335 = vunpack.c.h.b16 %v228
    %v336 = vunpack.c.l.b16 %v229
    %v337 = vunpack.c.l.b16 %v231
    %v338 = vunpack.c.h.b16 %v231
    %v339 = vunpack.c.l.b16 %v232
    %v340 = vunpack.c.l.b16 %v234
    %v341 = vunpack.c.h.b16 %v234
    %v342 = vunpack.c.l.b16 %v235
    %v343 = vunpack.c.l.b16 %v237
    %v344 = vunpack.c.h.b16 %v237
    %v345 = vunpack.c.l.b16 %v238
    %v346 = vunpack.c.l.b16 %v240
    %v347 = vunpack.c.h.b16 %v240
    %v348 = vunpack.c.l.b16 %v241
    %v349 = vunpack.c.l.b16 %v243
    %v350 = vunpack.c.h.b16 %v243
    %v351 = vunpack.c.l.b16 %v244
    %v352 = vunpack.c.l.b16 %v246
    %v353 = vunpack.c.h.b16 %v246
    %v354 = vunpack.c.l.b16 %v247
    %v355 = vunpack.c.l.b16 %v249
    %v356 = vunpack.c.h.b16 %v249
    %v357 = vunpack.c.l.b16 %v250
    %v358 = vpack.c.b16 %v337, %v334
    %v359 = vpack.c.b16 %v338, %v335
    %v360 = vpack.c.b16 %v339, %v336
    %v361 = vpack.c.b16 %v343, %v340
    %v362 = vpack.c.b16 %v344, %v341
    %v363 = vpack.c.b16 %v345, %v342
    %v364 = vpack.c.b16 %v349, %v346
    %v365 = vpack.c.b16 %v350, %v347
    %v366 = vpack.c.b16 %v351, %v348
    %v367 = vpack.c.b16 %v355, %v352
    %v368 = vpack.c.b16 %v356, %v353
    %v369 = vpack.c.b16 %v357, %v354
    %v383 = vsel %vm277, %v317, 0
    %385 = vmatpush.bf16.msra.mxu0 0
    %386 = vmatpush.bf16.msra.mxu0 0
    %387 = vmatpush.bf16.msra.mxu0 0
    %388 = vmatpush.bf16.msra.mxu0 0
    %389 = vmatpush.bf16.msra.mxu0 %v367
    %390 = vmatpush.bf16.msra.mxu0 %v364
    %391 = vmatpush.bf16.msra.mxu0 %v361
    %392 = vmatpush.bf16.msra.mxu0 %v358
    %393 = vmatmul.bf16.gmra.mxu0 %v383
    %v394 = vpop.f32.mrf.mxu0
    %v395 = vadd.f32 0.0, %v394
    %v396 = vpop.f32.mrf.mxu0
    %v397 = vadd.f32 0.0, %v396
    %398 = vdwg.mxu0
    %399 = vmatpush.bf16.msra.mxu0 0
    %400 = vmatpush.bf16.msra.mxu0 0
    %401 = vmatpush.bf16.msra.mxu0 0
    %402 = vmatpush.bf16.msra.mxu0 0
    %403 = vmatpush.bf16.msra.mxu0 %v368
    %404 = vmatpush.bf16.msra.mxu0 %v365
    %405 = vmatpush.bf16.msra.mxu0 %v362
    %406 = vmatpush.bf16.msra.mxu0 %v359
    %407 = vmatmul.bf16.gmra.mxu0 %v383
    %v408 = vpop.f32.mrf.mxu0
    %v409 = vadd.f32 0.0, %v408
    %v410 = vpop.f32.mrf.mxu0
    %v411 = vadd.f32 0.0, %v410
    %412 = vdwg.mxu0
    %413 = vmatpush.bf16.msra.mxu0 0
    %414 = vmatpush.bf16.msra.mxu0 0
    %415 = vmatpush.bf16.msra.mxu0 0
    %416 = vmatpush.bf16.msra.mxu0 0
    %417 = vmatpush.bf16.msra.mxu0 %v369
    %418 = vmatpush.bf16.msra.mxu0 %v366
    %419 = vmatpush.bf16.msra.mxu0 %v363
    %420 = vmatpush.bf16.msra.mxu0 %v360
    %421 = vmatmul.bf16.gmra.mxu0 %v383
    %v422 = vpop.f32.mrf.mxu0
    %v423 = vadd.f32 0.0, %v422
    %v424 = vpop.f32.mrf.mxu0
    %v425 = vadd.f32 0.0, %v424
    %426 = vdwg.mxu0
    %v427 = vpack.c.bf16 %v423, %v423
    %v428 = vpack.c.bf16 %v425, %v425
    %v429 = vmul.f32 %v395, %v225
    %v430 = vmul.f32 %v397, %v225
    %v431 = vmul.f32 %v409, %v226
    %v432 = vmul.f32 %v411, %v226
    %v433 = vadd.f32 %v429, %v431
    %v434 = vadd.f32 %v430, %v432
    %v435 = vpack.c.bf16 %v433, %v433
    %v436 = vpack.c.bf16 %v434, %v434
    %v438 = vunpack.c.l.b16 %v435
    %v439 = vpack.c.b16 %v438, %v438
    %440 = vrot.lane.b32.xlu0 %v439, 64
    %v441 = vpop.permute.xlu0 %440
    %vm442 = vcmask 130048
    %v444 = vsel %vm442, %v435, 0
    %v447 = vsel %vm442, %v441, 0
    %449 = vmatpush.bf16.xpose.msra.mxu0 0
    %450 = vmatpush.bf16.xpose.msra.mxu0 0
    %451 = vmatpush.bf16.xpose.msra.mxu0 0
    %452 = vmatpush.bf16.xpose.msra.mxu0 0
    %453 = vmatpush.bf16.xpose.msra.mxu0 0
    %454 = vmatpush.bf16.xpose.msra.mxu0 0
    %455 = vmatpush.bf16.xpose.msra.mxu0 0
    %456 = vmatpush.bf16.xpose.msra.mxu0 %v447
    %457 = vmatmul.bf16.gmra.mxu0 %v444
    %v458 = vpop.f32.mrf.mxu0
    %v459 = vadd.f32 %v224, %v458
    %v460 = vpop.f32.mrf.mxu0
    %461 = vdwg.mxu0
    %v463 = vunpack.c.l.b16 %v436
    %v464 = vpack.c.b16 %v463, %v463
    %465 = vrot.lane.b32.xlu0 %v464, 64
    %v466 = vpop.permute.xlu0 %465
    %v468 = vsel %vm442, %v436, 0
    %v471 = vsel %vm442, %v466, 0
    %473 = vmatpush.bf16.xpose.msra.mxu0 0
    %474 = vmatpush.bf16.xpose.msra.mxu0 0
    %475 = vmatpush.bf16.xpose.msra.mxu0 0
    %476 = vmatpush.bf16.xpose.msra.mxu0 0
    %477 = vmatpush.bf16.xpose.msra.mxu0 0
    %478 = vmatpush.bf16.xpose.msra.mxu0 0
    %479 = vmatpush.bf16.xpose.msra.mxu0 0
    %480 = vmatpush.bf16.xpose.msra.mxu0 %v471
    %481 = vmatmul.bf16.gmra.mxu0 %v468
    %v482 = vpop.f32.mrf.mxu0
    %v483 = vadd.f32 %v224, %v482
    %v484 = vpop.f32.mrf.mxu0
    %485 = vdwg.mxu0
    %vm486 = vcmask 64512
    %v487 = vsel %vm486, %v459, -inf
    %488 = vmax.xlane.f32.xlu0 %v487
    %v489 = vpop.xlane.xlu0 %488
    %v490 = vsel %vm486, %v483, -inf
    %491 = vmax.xlane.f32.xlu0 %v490
    %v492 = vpop.xlane.xlu0 %491
    %v493 = vsub.f32 %v459, %v489
    %v494 = vsub.f32 %v483, %v492
    %v495 = vmul.f32 %v493, 1.442695
    %v496 = vpow.pop %v495
    %v497 = vmul.f32 %v494, 1.442695
    %v498 = vpow.pop %v497
    %v499 = vsel %vm486, %v496, 0.0
    %500 = vadd.xlane.f32.xlu0 %v499
    %v501 = vpop.xlane.xlu0 %500
    %v502 = vsel %vm486, %v498, 0.0
    %503 = vadd.xlane.f32.xlu0 %v502
    %v504 = vpop.xlane.xlu0 %503
    %v505 = vrcp.pop %v501
    %v506 = vrcp.pop %v504
    %v507 = vmul.f32 %v496, %v505
    %v508 = vmul.f32 %v498, %v506
    %v509 = vpack.c.bf16 %v507, %v507
    %v510 = vpack.c.bf16 %v508, %v508
    %v512 = vsel %vm486, %v509, 0
    %vm514 = vcmask 1043456
    %v516 = vsel %vm514, %v427, 0
    %518 = vmatpush.bf16.msra.mxu0 0
    %519 = vmatpush.bf16.msra.mxu0 0
    %520 = vmatpush.bf16.msra.mxu0 0
    %521 = vmatpush.bf16.msra.mxu0 0
    %522 = vmatpush.bf16.msra.mxu0 0
    %523 = vmatpush.bf16.msra.mxu0 0
    %524 = vmatpush.bf16.msra.mxu0 0
    %525 = vmatpush.bf16.msra.mxu0 %v516
    %526 = vmatmul.bf16.gmra.mxu0 %v512
    %v527 = vpop.f32.mrf.mxu0
    %v528 = vadd.f32 0.0, %v527
    %v529 = vpop.f32.mrf.mxu0
    %530 = vdwg.mxu0
    %v532 = vsel %vm486, %v510, 0
    %v535 = vsel %vm514, %v428, 0
    %537 = vmatpush.bf16.msra.mxu0 0
    %538 = vmatpush.bf16.msra.mxu0 0
    %539 = vmatpush.bf16.msra.mxu0 0
    %540 = vmatpush.bf16.msra.mxu0 0
    %541 = vmatpush.bf16.msra.mxu0 0
    %542 = vmatpush.bf16.msra.mxu0 0
    %543 = vmatpush.bf16.msra.mxu0 0
    %544 = vmatpush.bf16.msra.mxu0 %v535
    %545 = vmatmul.bf16.gmra.mxu0 %v532
    %v546 = vpop.f32.mrf.mxu0
    %v547 = vadd.f32 0.0, %v546
    %v548 = vpop.f32.mrf.mxu0
    %549 = vdwg.mxu0
    %550 = vrot.lane.b32.xlu0 %v439, 112
    %v551 = vpop.permute.xlu0 %550
    %552 = vrot.lane.b32.xlu0 %v439, 48
    %v553 = vpop.permute.xlu0 %552
    %v555 = vsel %vm442, %v551, 0
    %v558 = vsel %vm442, %v553, 0
    %560 = vmatpush.bf16.xpose.msra.mxu0 0
    %561 = vmatpush.bf16.xpose.msra.mxu0 0
    %562 = vmatpush.bf16.xpose.msra.mxu0 0
    %563 = vmatpush.bf16.xpose.msra.mxu0 0
    %564 = vmatpush.bf16.xpose.msra.mxu0 0
    %565 = vmatpush.bf16.xpose.msra.mxu0 0
    %566 = vmatpush.bf16.xpose.msra.mxu0 0
    %567 = vmatpush.bf16.xpose.msra.mxu0 %v558
    %568 = vmatmul.bf16.gmra.mxu0 %v555
    %v569 = vpop.f32.mrf.mxu0
    %v570 = vadd.f32 %v224, %v569
    %v571 = vpop.f32.mrf.mxu0
    %572 = vdwg.mxu0
    %573 = vrot.lane.b32.xlu0 %v464, 112
    %v574 = vpop.permute.xlu0 %573
    %575 = vrot.lane.b32.xlu0 %v464, 48
    %v576 = vpop.permute.xlu0 %575
    %v578 = vsel %vm442, %v574, 0
    %v581 = vsel %vm442, %v576, 0
    %583 = vmatpush.bf16.xpose.msra.mxu0 0
    %584 = vmatpush.bf16.xpose.msra.mxu0 0
    %585 = vmatpush.bf16.xpose.msra.mxu0 0
    %586 = vmatpush.bf16.xpose.msra.mxu0 0
    %587 = vmatpush.bf16.xpose.msra.mxu0 0
    %588 = vmatpush.bf16.xpose.msra.mxu0 0
    %589 = vmatpush.bf16.xpose.msra.mxu0 0
    %590 = vmatpush.bf16.xpose.msra.mxu0 %v581
    %591 = vmatmul.bf16.gmra.mxu0 %v578
    %v592 = vpop.f32.mrf.mxu0
    %v593 = vadd.f32 %v224, %v592
    %v594 = vpop.f32.mrf.mxu0
    %595 = vdwg.mxu0
    %v596 = vsel %vm486, %v570, -inf
    %597 = vmax.xlane.f32.xlu0 %v596
    %v598 = vpop.xlane.xlu0 %597
    %v599 = vsel %vm486, %v593, -inf
    %600 = vmax.xlane.f32.xlu0 %v599
    %v601 = vpop.xlane.xlu0 %600
    %v602 = vsub.f32 %v570, %v598
    %v603 = vsub.f32 %v593, %v601
    %v604 = vmul.f32 %v602, 1.442695
    %v605 = vpow.pop %v604
    %v606 = vmul.f32 %v603, 1.442695
    %v607 = vpow.pop %v606
    %v608 = vsel %vm486, %v605, 0.0
    %609 = vadd.xlane.f32.xlu0 %v608
    %v610 = vpop.xlane.xlu0 %609
    %v611 = vsel %vm486, %v607, 0.0
    %612 = vadd.xlane.f32.xlu0 %v611
    %v613 = vpop.xlane.xlu0 %612
    %v614 = vrcp.pop %v610
    %v615 = vrcp.pop %v613
    %v616 = vmul.f32 %v605, %v614
    %v617 = vmul.f32 %v607, %v615
    %v618 = vpack.c.bf16 %v616, %v616
    %v619 = vpack.c.bf16 %v617, %v617
    %v621 = vunpack.c.l.b16 %v427
    %v622 = vpack.c.b16 %v621, %v621
    %623 = vrot.lane.b32.xlu0 %v622, 112
    %v624 = vpop.permute.xlu0 %623
    %v626 = vsel %vm486, %v618, 0
    %v629 = vsel %vm514, %v624, 0
    %631 = vmatpush.bf16.msra.mxu0 0
    %632 = vmatpush.bf16.msra.mxu0 0
    %633 = vmatpush.bf16.msra.mxu0 0
    %634 = vmatpush.bf16.msra.mxu0 0
    %635 = vmatpush.bf16.msra.mxu0 0
    %636 = vmatpush.bf16.msra.mxu0 0
    %637 = vmatpush.bf16.msra.mxu0 0
    %638 = vmatpush.bf16.msra.mxu0 %v629
    %639 = vmatmul.bf16.gmra.mxu0 %v626
    %v640 = vpop.f32.mrf.mxu0
    %v641 = vadd.f32 0.0, %v640
    %v642 = vpop.f32.mrf.mxu0
    %643 = vdwg.mxu0
    %v645 = vunpack.c.l.b16 %v428
    %v646 = vpack.c.b16 %v645, %v645
    %647 = vrot.lane.b32.xlu0 %v646, 112
    %v648 = vpop.permute.xlu0 %647
    %v650 = vsel %vm486, %v619, 0
    %v653 = vsel %vm514, %v648, 0
    %655 = vmatpush.bf16.msra.mxu0 0
    %656 = vmatpush.bf16.msra.mxu0 0
    %657 = vmatpush.bf16.msra.mxu0 0
    %658 = vmatpush.bf16.msra.mxu0 0
    %659 = vmatpush.bf16.msra.mxu0 0
    %660 = vmatpush.bf16.msra.mxu0 0
    %661 = vmatpush.bf16.msra.mxu0 0
    %662 = vmatpush.bf16.msra.mxu0 %v653
    %663 = vmatmul.bf16.gmra.mxu0 %v650
    %v664 = vpop.f32.mrf.mxu0
    %v665 = vadd.f32 0.0, %v664
    %v666 = vpop.f32.mrf.mxu0
    %667 = vdwg.mxu0
    %668 = vrot.lane.b32.xlu0 %v439, 96
    %v669 = vpop.permute.xlu0 %668
    %670 = vrot.lane.b32.xlu0 %v439, 32
    %v671 = vpop.permute.xlu0 %670
    %v673 = vsel %vm442, %v669, 0
    %v676 = vsel %vm442, %v671, 0
    %678 = vmatpush.bf16.xpose.msra.mxu0 0
    %679 = vmatpush.bf16.xpose.msra.mxu0 0
    %680 = vmatpush.bf16.xpose.msra.mxu0 0
    %681 = vmatpush.bf16.xpose.msra.mxu0 0
    %682 = vmatpush.bf16.xpose.msra.mxu0 0
    %683 = vmatpush.bf16.xpose.msra.mxu0 0
    %684 = vmatpush.bf16.xpose.msra.mxu0 0
    %685 = vmatpush.bf16.xpose.msra.mxu0 %v676
    %686 = vmatmul.bf16.gmra.mxu0 %v673
    %v687 = vpop.f32.mrf.mxu0
    %v688 = vadd.f32 %v224, %v687
    %v689 = vpop.f32.mrf.mxu0
    %690 = vdwg.mxu0
    %691 = vrot.lane.b32.xlu0 %v464, 96
    %v692 = vpop.permute.xlu0 %691
    %693 = vrot.lane.b32.xlu0 %v464, 32
    %v694 = vpop.permute.xlu0 %693
    %v696 = vsel %vm442, %v692, 0
    %v699 = vsel %vm442, %v694, 0
    %701 = vmatpush.bf16.xpose.msra.mxu0 0
    %702 = vmatpush.bf16.xpose.msra.mxu0 0
    %703 = vmatpush.bf16.xpose.msra.mxu0 0
    %704 = vmatpush.bf16.xpose.msra.mxu0 0
    %705 = vmatpush.bf16.xpose.msra.mxu0 0
    %706 = vmatpush.bf16.xpose.msra.mxu0 0
    %707 = vmatpush.bf16.xpose.msra.mxu0 0
    %708 = vmatpush.bf16.xpose.msra.mxu0 %v699
    %709 = vmatmul.bf16.gmra.mxu0 %v696
    %v710 = vpop.f32.mrf.mxu0
    %v711 = vadd.f32 %v224, %v710
    %v712 = vpop.f32.mrf.mxu0
    %713 = vdwg.mxu0
    %v714 = vsel %vm486, %v688, -inf
    %715 = vmax.xlane.f32.xlu0 %v714
    %v716 = vpop.xlane.xlu0 %715
    %v717 = vsel %vm486, %v711, -inf
    %718 = vmax.xlane.f32.xlu0 %v717
    %v719 = vpop.xlane.xlu0 %718
    %v720 = vsub.f32 %v688, %v716
    %v721 = vsub.f32 %v711, %v719
    %v722 = vmul.f32 %v720, 1.442695
    %v723 = vpow.pop %v722
    %v724 = vmul.f32 %v721, 1.442695
    %v725 = vpow.pop %v724
    %v726 = vsel %vm486, %v723, 0.0
    %727 = vadd.xlane.f32.xlu0 %v726
    %v728 = vpop.xlane.xlu0 %727
    %v729 = vsel %vm486, %v725, 0.0
    %730 = vadd.xlane.f32.xlu0 %v729
    %v731 = vpop.xlane.xlu0 %730
    %v732 = vrcp.pop %v728
    %v733 = vrcp.pop %v731
    %v734 = vmul.f32 %v723, %v732
    %v735 = vmul.f32 %v725, %v733
    %v736 = vpack.c.bf16 %v734, %v734
    %v737 = vpack.c.bf16 %v735, %v735
    %738 = vrot.lane.b32.xlu0 %v622, 96
    %v739 = vpop.permute.xlu0 %738
    %v741 = vsel %vm486, %v736, 0
    %v744 = vsel %vm514, %v739, 0
    %746 = vmatpush.bf16.msra.mxu0 0
    %747 = vmatpush.bf16.msra.mxu0 0
    %748 = vmatpush.bf16.msra.mxu0 0
    %749 = vmatpush.bf16.msra.mxu0 0
    %750 = vmatpush.bf16.msra.mxu0 0
    %751 = vmatpush.bf16.msra.mxu0 0
    %752 = vmatpush.bf16.msra.mxu0 0
    %753 = vmatpush.bf16.msra.mxu0 %v744
    %754 = vmatmul.bf16.gmra.mxu0 %v741
    %v755 = vpop.f32.mrf.mxu0
    %v756 = vadd.f32 0.0, %v755
    %v757 = vpop.f32.mrf.mxu0
    %758 = vdwg.mxu0
    %759 = vrot.lane.b32.xlu0 %v646, 96
    %v760 = vpop.permute.xlu0 %759
    %v762 = vsel %vm486, %v737, 0
    %v765 = vsel %vm514, %v760, 0
    %767 = vmatpush.bf16.msra.mxu0 0
    %768 = vmatpush.bf16.msra.mxu0 0
    %769 = vmatpush.bf16.msra.mxu0 0
    %770 = vmatpush.bf16.msra.mxu0 0
    %771 = vmatpush.bf16.msra.mxu0 0
    %772 = vmatpush.bf16.msra.mxu0 0
    %773 = vmatpush.bf16.msra.mxu0 0
    %774 = vmatpush.bf16.msra.mxu0 %v765
    %775 = vmatmul.bf16.gmra.mxu0 %v762
    %v776 = vpop.f32.mrf.mxu0
    %v777 = vadd.f32 0.0, %v776
    %v778 = vpop.f32.mrf.mxu0
    %779 = vdwg.mxu0
    %780 = vrot.lane.b32.xlu0 %v439, 80
    %v781 = vpop.permute.xlu0 %780
    %782 = vrot.lane.b32.xlu0 %v439, 16
    %v783 = vpop.permute.xlu0 %782
    %v785 = vsel %vm442, %v781, 0
    %v788 = vsel %vm442, %v783, 0
    %790 = vmatpush.bf16.xpose.msra.mxu0 0
    %791 = vmatpush.bf16.xpose.msra.mxu0 0
    %792 = vmatpush.bf16.xpose.msra.mxu0 0
    %793 = vmatpush.bf16.xpose.msra.mxu0 0
    %794 = vmatpush.bf16.xpose.msra.mxu0 0
    %795 = vmatpush.bf16.xpose.msra.mxu0 0
    %796 = vmatpush.bf16.xpose.msra.mxu0 0
    %797 = vmatpush.bf16.xpose.msra.mxu0 %v788
    %798 = vmatmul.bf16.gmra.mxu0 %v785
    %v799 = vpop.f32.mrf.mxu0
    %v800 = vadd.f32 %v224, %v799
    %v801 = vpop.f32.mrf.mxu0
    %802 = vdwg.mxu0
    %803 = vrot.lane.b32.xlu0 %v464, 80
    %v804 = vpop.permute.xlu0 %803
    %805 = vrot.lane.b32.xlu0 %v464, 16
    %v806 = vpop.permute.xlu0 %805
    %v808 = vsel %vm442, %v804, 0
    %v811 = vsel %vm442, %v806, 0
    %813 = vmatpush.bf16.xpose.msra.mxu0 0
    %814 = vmatpush.bf16.xpose.msra.mxu0 0
    %815 = vmatpush.bf16.xpose.msra.mxu0 0
    %816 = vmatpush.bf16.xpose.msra.mxu0 0
    %817 = vmatpush.bf16.xpose.msra.mxu0 0
    %818 = vmatpush.bf16.xpose.msra.mxu0 0
    %819 = vmatpush.bf16.xpose.msra.mxu0 0
    %820 = vmatpush.bf16.xpose.msra.mxu0 %v811
    %821 = vmatmul.bf16.gmra.mxu0 %v808
    %v822 = vpop.f32.mrf.mxu0
    %v823 = vadd.f32 %v224, %v822
    %v824 = vpop.f32.mrf.mxu0
    %825 = vdwg.mxu0
    %v826 = vsel %vm486, %v800, -inf
    %827 = vmax.xlane.f32.xlu0 %v826
    %v828 = vpop.xlane.xlu0 %827
    %v829 = vsel %vm486, %v823, -inf
    %830 = vmax.xlane.f32.xlu0 %v829
    %v831 = vpop.xlane.xlu0 %830
    %v832 = vsub.f32 %v800, %v828
    %v833 = vsub.f32 %v823, %v831
    %v834 = vmul.f32 %v832, 1.442695
    %v835 = vpow.pop %v834
    %v836 = vmul.f32 %v833, 1.442695
    %v837 = vpow.pop %v836
    %v838 = vsel %vm486, %v835, 0.0
    %839 = vadd.xlane.f32.xlu0 %v838
    %v840 = vpop.xlane.xlu0 %839
    %v841 = vsel %vm486, %v837, 0.0
    %842 = vadd.xlane.f32.xlu0 %v841
    %v843 = vpop.xlane.xlu0 %842
    %v844 = vrcp.pop %v840
    %v845 = vrcp.pop %v843
    %v846 = vmul.f32 %v835, %v844
    %v847 = vmul.f32 %v837, %v845
    %v848 = vpack.c.bf16 %v846, %v846
    %v849 = vpack.c.bf16 %v847, %v847
    %850 = vrot.lane.b32.xlu0 %v622, 80
    %v851 = vpop.permute.xlu0 %850
    %v853 = vsel %vm486, %v848, 0
    %v856 = vsel %vm514, %v851, 0
    %858 = vmatpush.bf16.msra.mxu0 0
    %859 = vmatpush.bf16.msra.mxu0 0
    %860 = vmatpush.bf16.msra.mxu0 0
    %861 = vmatpush.bf16.msra.mxu0 0
    %862 = vmatpush.bf16.msra.mxu0 0
    %863 = vmatpush.bf16.msra.mxu0 0
    %864 = vmatpush.bf16.msra.mxu0 0
    %865 = vmatpush.bf16.msra.mxu0 %v856
    %866 = vmatmul.bf16.gmra.mxu0 %v853
    %v867 = vpop.f32.mrf.mxu0
    %v868 = vadd.f32 0.0, %v867
    %v869 = vpop.f32.mrf.mxu0
    %870 = vdwg.mxu0
    %871 = vrot.lane.b32.xlu0 %v646, 80
    %v872 = vpop.permute.xlu0 %871
    %v874 = vsel %vm486, %v849, 0
    %v877 = vsel %vm514, %v872, 0
    %879 = vmatpush.bf16.msra.mxu0 0
    %880 = vmatpush.bf16.msra.mxu0 0
    %881 = vmatpush.bf16.msra.mxu0 0
    %882 = vmatpush.bf16.msra.mxu0 0
    %883 = vmatpush.bf16.msra.mxu0 0
    %884 = vmatpush.bf16.msra.mxu0 0
    %885 = vmatpush.bf16.msra.mxu0 0
    %886 = vmatpush.bf16.msra.mxu0 %v877
    %887 = vmatmul.bf16.gmra.mxu0 %v874
    %v888 = vpop.f32.mrf.mxu0
    %v889 = vadd.f32 0.0, %v888
    %v890 = vpop.f32.mrf.mxu0
    %891 = vdwg.mxu0
    %894 = vrot.lane.b32.xlu0 %v641, 16
    %v895 = vpop.permute.xlu0 %894
    %896 = vrot.lane.b32.xlu0 %v665, 16
    %v897 = vpop.permute.xlu0 %896
    %902 = vrot.lane.b32.xlu0 %v756, 32
    %v903 = vpop.permute.xlu0 %902
    %904 = vrot.lane.b32.xlu0 %v777, 32
    %v905 = vpop.permute.xlu0 %904
    %910 = vrot.lane.b32.xlu0 %v868, 48
    %v911 = vpop.permute.xlu0 %910
    %912 = vrot.lane.b32.xlu0 %v889, 48
    %v913 = vpop.permute.xlu0 %912
    %v916 = vsel %vm442, %v528, %v895
    %v917 = vsel %vm442, %v547, %v897
    %vm918 = vcmask 261120
    %v919 = vsel %vm918, %v916, %v903
    %v920 = vsel %vm918, %v917, %v905
    %vm921 = vcmask 392192
    %v922 = vsel %vm921, %v919, %v911
    %v923 = vsel %vm921, %v920, %v913
    %v924 = vpack.c.bf16 %v923, %v922
    %v933 = vunpack.c.l.b16 %v251
    %v934 = vunpack.c.l.b16 %v252
    %v935 = vunpack.c.l.b16 %v253
    %v936 = vunpack.c.l.b16 %v254
    %v937 = vunpack.c.l.b16 %v255
    %v938 = vunpack.c.l.b16 %v256
    %v939 = vunpack.c.l.b16 %v257
    %v940 = vunpack.c.l.b16 %v258
    %v941 = vpack.c.b16 %v934, %v933
    %v942 = vpack.c.b16 %v936, %v935
    %v943 = vpack.c.b16 %v938, %v937
    %v944 = vpack.c.b16 %v940, %v939
    %v950 = vsel %vm277, %v924, 0
    %952 = vmatpush.bf16.msra.mxu0 0
    %953 = vmatpush.bf16.msra.mxu0 0
    %954 = vmatpush.bf16.msra.mxu0 0
    %955 = vmatpush.bf16.msra.mxu0 0
    %956 = vmatpush.bf16.msra.mxu0 %v944
    %957 = vmatpush.bf16.msra.mxu0 %v943
    %958 = vmatpush.bf16.msra.mxu0 %v942
    %959 = vmatpush.bf16.msra.mxu0 %v941
    %960 = vmatmul.bf16.gmra.mxu0 %v950
    %v961 = vpop.f32.mrf.mxu0
    %v962 = vadd.f32 0.0, %v961
    %v963 = vpop.f32.mrf.mxu0
    %v964 = vadd.f32 0.0, %v963
    %965 = vdwg.mxu0
    %v966 = vadd.f32 %v217, %v962
    %v967 = vadd.f32 %v219, %v964
    %v968 = vmul.f32 %v966, %v966
    %v969 = vmul.f32 %v967, %v967
    %v970 = vsel %vm277, %v968, 0.0
    %971 = vadd.xlane.f32.xlu0 %v970
    %v972 = vpop.xlane.xlu0 %971
    %v973 = vsel %vm277, %v969, 0.0
    %974 = vadd.xlane.f32.xlu0 %v973
    %v975 = vpop.xlane.xlu0 %974
    %v976 = vmul.f32 %v972, %v290
    %v977 = vmul.f32 %v975, %v290
    %v978 = vadd.f32 %v976, 1e-05
    %v979 = vadd.f32 %v977, 1e-05
    %v980 = vrsqrt.pop %v978
    %v981 = vmul.f32 %v980, %v978
    %v982 = vmul.f32 %v981, %v980
    %v983 = vmul.f32 0.5, %v982
    %v984 = vsub.f32 1.5, %v983
    %v985 = vmul.f32 %v980, %v984
    %vm986 = vweird.f32 %v978
    %vm987 = vweird.f32 %v980
    %vm988 = vmor %vm986, %vm987
    %v989 = vsel %vm988, %v980, %v985
    %v990 = vrsqrt.pop %v979
    %v991 = vmul.f32 %v990, %v979
    %v992 = vmul.f32 %v991, %v990
    %v993 = vmul.f32 0.5, %v992
    %v994 = vsub.f32 1.5, %v993
    %v995 = vmul.f32 %v990, %v994
    %vm996 = vweird.f32 %v979
    %vm997 = vweird.f32 %v990
    %vm998 = vmor %vm996, %vm997
    %v999 = vsel %vm998, %v990, %v995
    %v1000 = vmul.f32 %v966, %v989
    %v1001 = vmul.f32 %v967, %v999
    %v1002 = vpack.c.bf16 %v1001, %v1000
    %v1011 = vunpack.c.l.b16 %v227
    %v1012 = vunpack.c.h.b16 %v227
    %v1013 = vunpack.c.l.b16 %v230
    %v1014 = vunpack.c.h.b16 %v230
    %v1015 = vunpack.c.l.b16 %v233
    %v1016 = vunpack.c.h.b16 %v233
    %v1017 = vunpack.c.l.b16 %v236
    %v1018 = vunpack.c.h.b16 %v236
    %v1019 = vunpack.c.l.b16 %v239
    %v1020 = vunpack.c.h.b16 %v239
    %v1021 = vunpack.c.l.b16 %v242
    %v1022 = vunpack.c.h.b16 %v242
    %v1023 = vunpack.c.l.b16 %v245
    %v1024 = vunpack.c.h.b16 %v245
    %v1025 = vunpack.c.l.b16 %v248
    %v1026 = vunpack.c.h.b16 %v248
    %v1027 = vpack.c.b16 %v1013, %v1011
    %v1028 = vpack.c.b16 %v1014, %v1012
    %v1029 = vpack.c.b16 %v1017, %v1015
    %v1030 = vpack.c.b16 %v1018, %v1016
    %v1031 = vpack.c.b16 %v1021, %v1019
    %v1032 = vpack.c.b16 %v1022, %v1020
    %v1033 = vpack.c.b16 %v1025, %v1023
    %v1034 = vpack.c.b16 %v1026, %v1024
    %v1044 = vsel %vm277, %v1002, 0
    %1046 = vmatpush.bf16.msra.mxu0 0
    %1047 = vmatpush.bf16.msra.mxu0 0
    %1048 = vmatpush.bf16.msra.mxu0 0
    %1049 = vmatpush.bf16.msra.mxu0 0
    %1050 = vmatpush.bf16.msra.mxu0 %v1033
    %1051 = vmatpush.bf16.msra.mxu0 %v1031
    %1052 = vmatpush.bf16.msra.mxu0 %v1029
    %1053 = vmatpush.bf16.msra.mxu0 %v1027
    %1054 = vmatmul.bf16.gmra.mxu0 %v1044
    %v1055 = vpop.f32.mrf.mxu0
    %v1056 = vadd.f32 0.0, %v1055
    %v1057 = vpop.f32.mrf.mxu0
    %v1058 = vadd.f32 0.0, %v1057
    %1059 = vdwg.mxu0
    %1060 = vmatpush.bf16.msra.mxu0 0
    %1061 = vmatpush.bf16.msra.mxu0 0
    %1062 = vmatpush.bf16.msra.mxu0 0
    %1063 = vmatpush.bf16.msra.mxu0 0
    %1064 = vmatpush.bf16.msra.mxu0 %v1034
    %1065 = vmatpush.bf16.msra.mxu0 %v1032
    %1066 = vmatpush.bf16.msra.mxu0 %v1030
    %1067 = vmatpush.bf16.msra.mxu0 %v1028
    %1068 = vmatmul.bf16.gmra.mxu0 %v1044
    %v1069 = vpop.f32.mrf.mxu0
    %v1070 = vadd.f32 0.0, %v1069
    %v1071 = vpop.f32.mrf.mxu0
    %v1072 = vadd.f32 0.0, %v1071
    %1073 = vdwg.mxu0
    %v1074 = vxor.u32 %v1056, 2147483648
    %v1075 = vxor.u32 %v1058, 2147483648
    %v1076 = vmul.f32 %v1074, 1.442695
    %v1077 = vpow.pop %v1076
    %v1078 = vmul.f32 %v1075, 1.442695
    %v1079 = vpow.pop %v1078
    %v1080 = vadd.f32 %v1077, 1.0
    %v1081 = vadd.f32 %v1079, 1.0
    %v1082 = vrcp.pop %v1080
    %v1083 = vmul.f32 %v1080, %v1082
    %v1084 = vsub.f32 1.0, %v1083
    %v1085 = vmul.f32 %v1082, %v1084
    %v1086 = vadd.f32 %v1082, %v1085
    %vm1087 = vweird.f32 %v1080
    %vm1088 = vweird.f32 %v1082
    %vm1089 = vmor %vm1087, %vm1088
    %v1090 = vsel %vm1089, %v1082, %v1086
    %v1091 = vand.u32 2147483647, %v1080
    %vm1092 = vcmp.eq.f32.partialorder %v1091, 8.507059e+37
    %v1093 = vand.u32 %v1080, 2147483648
    %v1094 = vor.u32 1.1754944e-38, %v1093
    %v1095 = vsel %vm1092, %v1094, %v1090
    %v1096 = vmul.f32 1.0, %v1095
    %v1097 = vrcp.pop %v1081
    %v1098 = vmul.f32 %v1081, %v1097
    %v1099 = vsub.f32 1.0, %v1098
    %v1100 = vmul.f32 %v1097, %v1099
    %v1101 = vadd.f32 %v1097, %v1100
    %vm1102 = vweird.f32 %v1081
    %vm1103 = vweird.f32 %v1097
    %vm1104 = vmor %vm1102, %vm1103
    %v1105 = vsel %vm1104, %v1097, %v1101
    %v1106 = vand.u32 2147483647, %v1081
    %vm1107 = vcmp.eq.f32.partialorder %v1106, 8.507059e+37
    %v1108 = vand.u32 %v1081, 2147483648
    %v1109 = vor.u32 1.1754944e-38, %v1108
    %v1110 = vsel %vm1107, %v1109, %v1105
    %v1111 = vmul.f32 1.0, %v1110
    %v1112 = vmul.f32 %v1056, %v1096
    %v1113 = vmul.f32 %v1058, %v1111
    %v1114 = vmul.f32 %v1112, %v1070
    %v1115 = vmul.f32 %v1113, %v1072
    %v1116 = vpack.c.bf16 %v1115, %v1114
    %v1133 = vunpack.c.l.b16 %v259
    %v1134 = vunpack.c.l.b16 %v260
    %v1135 = vunpack.c.l.b16 %v261
    %v1136 = vunpack.c.l.b16 %v262
    %v1137 = vunpack.c.l.b16 %v263
    %v1138 = vunpack.c.l.b16 %v264
    %v1139 = vunpack.c.l.b16 %v265
    %v1140 = vunpack.c.l.b16 %v266
    %v1141 = vunpack.c.l.b16 %v267
    %v1142 = vunpack.c.l.b16 %v268
    %v1143 = vunpack.c.l.b16 %v269
    %v1144 = vunpack.c.l.b16 %v270
    %v1145 = vunpack.c.l.b16 %v271
    %v1146 = vunpack.c.l.b16 %v272
    %v1147 = vunpack.c.l.b16 %v273
    %v1148 = vunpack.c.l.b16 %v274
    %v1149 = vpack.c.b16 %v1134, %v1133
    %v1150 = vpack.c.b16 %v1136, %v1135
    %v1151 = vpack.c.b16 %v1138, %v1137
    %v1152 = vpack.c.b16 %v1140, %v1139
    %v1153 = vpack.c.b16 %v1142, %v1141
    %v1154 = vpack.c.b16 %v1144, %v1143
    %v1155 = vpack.c.b16 %v1146, %v1145
    %v1156 = vpack.c.b16 %v1148, %v1147
    %1165 = vmatpush.bf16.msra.mxu0 %v1156
    %1166 = vmatpush.bf16.msra.mxu0 %v1155
    %1167 = vmatpush.bf16.msra.mxu0 %v1154
    %1168 = vmatpush.bf16.msra.mxu0 %v1153
    %1169 = vmatpush.bf16.msra.mxu0 %v1152
    %1170 = vmatpush.bf16.msra.mxu0 %v1151
    %1171 = vmatpush.bf16.msra.mxu0 %v1150
    %1172 = vmatpush.bf16.msra.mxu0 %v1149
    %1173 = vmatmul.bf16.gmra.mxu0 %v1116
    %v1174 = vpop.f32.mrf.mxu0
    %v1175 = vadd.f32 0.0, %v1174
    %v1176 = vpop.f32.mrf.mxu0
    %v1177 = vadd.f32 0.0, %v1176
    %1178 = vdwg.mxu0
    %v1179 = vadd.f32 %v966, %v1175
    %v1180 = vadd.f32 %v967, %v1177
    %s1181 = scalar_lea.vmem %s2, 160
    %v1182 = vld [vmem:[%s1181] sm:$0xff]
    %v1183 = vld [vmem:[%s1181 + $0x8] sm:$0xff]
    %v1184 = vld [vmem:[%s1181 + $0x10] sm:$0xf]
    %v1185 = vld [vmem:[%s1181 + $0x14] sm:$0xff]
    %v1186 = vld [vmem:[%s1181 + $0x1c] sm:$0xff]
    %v1187 = vld [vmem:[%s1181 + $0x24] sm:$0xf]
    %v1188 = vld [vmem:[%s1181 + $0x28] sm:$0xff]
    %v1189 = vld [vmem:[%s1181 + $0x30] sm:$0xff]
    %v1190 = vld [vmem:[%s1181 + $0x38] sm:$0xf]
    %v1191 = vld [vmem:[%s1181 + $0x3c] sm:$0xff]
    %v1192 = vld [vmem:[%s1181 + $0x44] sm:$0xff]
    %v1193 = vld [vmem:[%s1181 + $0x4c] sm:$0xf]
    %v1194 = vld [vmem:[%s1181 + $0x50] sm:$0xff]
    %v1195 = vld [vmem:[%s1181 + $0x58] sm:$0xff]
    %v1196 = vld [vmem:[%s1181 + $0x60] sm:$0xf]
    %v1197 = vld [vmem:[%s1181 + $0x64] sm:$0xff]
    %v1198 = vld [vmem:[%s1181 + $0x6c] sm:$0xff]
    %v1199 = vld [vmem:[%s1181 + $0x74] sm:$0xf]
    %v1200 = vld [vmem:[%s1181 + $0x78] sm:$0xff]
    %v1201 = vld [vmem:[%s1181 + $0x80] sm:$0xff]
    %v1202 = vld [vmem:[%s1181 + $0x88] sm:$0xf]
    %v1203 = vld [vmem:[%s1181 + $0x8c] sm:$0xff]
    %v1204 = vld [vmem:[%s1181 + $0x94] sm:$0xff]
    %v1205 = vld [vmem:[%s1181 + $0x9c] sm:$0xf]
    %s1206 = scalar_lea.vmem %s3, 96
    %v1207 = vld [vmem:[%s1206] sm:$0xf]
    %v1208 = vld [vmem:[%s1206 + $0x4] sm:$0xf]
    %v1209 = vld [vmem:[%s1206 + $0x8] sm:$0xf]
    %v1210 = vld [vmem:[%s1206 + $0xc] sm:$0xf]
    %v1211 = vld [vmem:[%s1206 + $0x10] sm:$0xf]
    %v1212 = vld [vmem:[%s1206 + $0x14] sm:$0xf]
    %v1213 = vld [vmem:[%s1206 + $0x18] sm:$0xf]
    %v1214 = vld [vmem:[%s1206 + $0x1c] sm:$0xf]
    %v1215 = vld [vmem:[%s1206 + $0x20] sm:$0xf]
    %v1216 = vld [vmem:[%s1206 + $0x24] sm:$0xf]
    %v1217 = vld [vmem:[%s1206 + $0x28] sm:$0xf]
    %v1218 = vld [vmem:[%s1206 + $0x2c] sm:$0xf]
    %v1219 = vld [vmem:[%s1206 + $0x30] sm:$0xf]
    %v1220 = vld [vmem:[%s1206 + $0x34] sm:$0xf]
    %v1221 = vld [vmem:[%s1206 + $0x38] sm:$0xf]
    %v1222 = vld [vmem:[%s1206 + $0x3c] sm:$0xf]
    %v1223 = vld [vmem:[%s1206 + $0x40] sm:$0xf]
    %v1224 = vld [vmem:[%s1206 + $0x44] sm:$0xf]
    %v1225 = vld [vmem:[%s1206 + $0x48] sm:$0xf]
    %v1226 = vld [vmem:[%s1206 + $0x4c] sm:$0xf]
    %v1227 = vld [vmem:[%s1206 + $0x50] sm:$0xf]
    %v1228 = vld [vmem:[%s1206 + $0x54] sm:$0xf]
    %v1229 = vld [vmem:[%s1206 + $0x58] sm:$0xf]
    %v1230 = vld [vmem:[%s1206 + $0x5c] sm:$0xf]
    %v1231 = vmul.f32 %v1179, %v1179
    %v1232 = vmul.f32 %v1180, %v1180
    %v1233 = vsel %vm277, %v1231, 0.0
    %1234 = vadd.xlane.f32.xlu0 %v1233
    %v1235 = vpop.xlane.xlu0 %1234
    %v1236 = vsel %vm277, %v1232, 0.0
    %1237 = vadd.xlane.f32.xlu0 %v1236
    %v1238 = vpop.xlane.xlu0 %1237
    %v1239 = vmul.f32 %v1235, %v290
    %v1240 = vmul.f32 %v1238, %v290
    %v1241 = vadd.f32 %v1239, 1e-05
    %v1242 = vadd.f32 %v1240, 1e-05
    %v1243 = vrsqrt.pop %v1241
    %v1244 = vmul.f32 %v1243, %v1241
    %v1245 = vmul.f32 %v1244, %v1243
    %v1246 = vmul.f32 0.5, %v1245
    %v1247 = vsub.f32 1.5, %v1246
    %v1248 = vmul.f32 %v1243, %v1247
    %vm1249 = vweird.f32 %v1241
    %vm1250 = vweird.f32 %v1243
    %vm1251 = vmor %vm1249, %vm1250
    %v1252 = vsel %vm1251, %v1243, %v1248
    %v1253 = vrsqrt.pop %v1242
    %v1254 = vmul.f32 %v1253, %v1242
    %v1255 = vmul.f32 %v1254, %v1253
    %v1256 = vmul.f32 0.5, %v1255
    %v1257 = vsub.f32 1.5, %v1256
    %v1258 = vmul.f32 %v1253, %v1257
    %vm1259 = vweird.f32 %v1242
    %vm1260 = vweird.f32 %v1253
    %vm1261 = vmor %vm1259, %vm1260
    %v1262 = vsel %vm1261, %v1253, %v1258
    %v1263 = vmul.f32 %v1179, %v1252
    %v1264 = vmul.f32 %v1180, %v1262
    %v1265 = vpack.c.bf16 %v1264, %v1263
    %v1282 = vunpack.c.l.b16 %v1183
    %v1283 = vunpack.c.h.b16 %v1183
    %v1284 = vunpack.c.l.b16 %v1184
    %v1285 = vunpack.c.l.b16 %v1186
    %v1286 = vunpack.c.h.b16 %v1186
    %v1287 = vunpack.c.l.b16 %v1187
    %v1288 = vunpack.c.l.b16 %v1189
    %v1289 = vunpack.c.h.b16 %v1189
    %v1290 = vunpack.c.l.b16 %v1190
    %v1291 = vunpack.c.l.b16 %v1192
    %v1292 = vunpack.c.h.b16 %v1192
    %v1293 = vunpack.c.l.b16 %v1193
    %v1294 = vunpack.c.l.b16 %v1195
    %v1295 = vunpack.c.h.b16 %v1195
    %v1296 = vunpack.c.l.b16 %v1196
    %v1297 = vunpack.c.l.b16 %v1198
    %v1298 = vunpack.c.h.b16 %v1198
    %v1299 = vunpack.c.l.b16 %v1199
    %v1300 = vunpack.c.l.b16 %v1201
    %v1301 = vunpack.c.h.b16 %v1201
    %v1302 = vunpack.c.l.b16 %v1202
    %v1303 = vunpack.c.l.b16 %v1204
    %v1304 = vunpack.c.h.b16 %v1204
    %v1305 = vunpack.c.l.b16 %v1205
    %v1306 = vpack.c.b16 %v1285, %v1282
    %v1307 = vpack.c.b16 %v1286, %v1283
    %v1308 = vpack.c.b16 %v1287, %v1284
    %v1309 = vpack.c.b16 %v1291, %v1288
    %v1310 = vpack.c.b16 %v1292, %v1289
    %v1311 = vpack.c.b16 %v1293, %v1290
    %v1312 = vpack.c.b16 %v1297, %v1294
    %v1313 = vpack.c.b16 %v1298, %v1295
    %v1314 = vpack.c.b16 %v1299, %v1296
    %v1315 = vpack.c.b16 %v1303, %v1300
    %v1316 = vpack.c.b16 %v1304, %v1301
    %v1317 = vpack.c.b16 %v1305, %v1302
    %v1331 = vsel %vm277, %v1265, 0
    %1333 = vmatpush.bf16.msra.mxu0 0
    %1334 = vmatpush.bf16.msra.mxu0 0
    %1335 = vmatpush.bf16.msra.mxu0 0
    %1336 = vmatpush.bf16.msra.mxu0 0
    %1337 = vmatpush.bf16.msra.mxu0 %v1315
    %1338 = vmatpush.bf16.msra.mxu0 %v1312
    %1339 = vmatpush.bf16.msra.mxu0 %v1309
    %1340 = vmatpush.bf16.msra.mxu0 %v1306
    %1341 = vmatmul.bf16.gmra.mxu0 %v1331
    %v1342 = vpop.f32.mrf.mxu0
    %v1343 = vadd.f32 0.0, %v1342
    %v1344 = vpop.f32.mrf.mxu0
    %v1345 = vadd.f32 0.0, %v1344
    %1346 = vdwg.mxu0
    %1347 = vmatpush.bf16.msra.mxu0 0
    %1348 = vmatpush.bf16.msra.mxu0 0
    %1349 = vmatpush.bf16.msra.mxu0 0
    %1350 = vmatpush.bf16.msra.mxu0 0
    %1351 = vmatpush.bf16.msra.mxu0 %v1316
    %1352 = vmatpush.bf16.msra.mxu0 %v1313
    %1353 = vmatpush.bf16.msra.mxu0 %v1310
    %1354 = vmatpush.bf16.msra.mxu0 %v1307
    %1355 = vmatmul.bf16.gmra.mxu0 %v1331
    %v1356 = vpop.f32.mrf.mxu0
    %v1357 = vadd.f32 0.0, %v1356
    %v1358 = vpop.f32.mrf.mxu0
    %v1359 = vadd.f32 0.0, %v1358
    %1360 = vdwg.mxu0
    %1361 = vmatpush.bf16.msra.mxu0 0
    %1362 = vmatpush.bf16.msra.mxu0 0
    %1363 = vmatpush.bf16.msra.mxu0 0
    %1364 = vmatpush.bf16.msra.mxu0 0
    %1365 = vmatpush.bf16.msra.mxu0 %v1317
    %1366 = vmatpush.bf16.msra.mxu0 %v1314
    %1367 = vmatpush.bf16.msra.mxu0 %v1311
    %1368 = vmatpush.bf16.msra.mxu0 %v1308
    %1369 = vmatmul.bf16.gmra.mxu0 %v1331
    %v1370 = vpop.f32.mrf.mxu0
    %v1371 = vadd.f32 0.0, %v1370
    %v1372 = vpop.f32.mrf.mxu0
    %v1373 = vadd.f32 0.0, %v1372
    %1374 = vdwg.mxu0
    %v1375 = vpack.c.bf16 %v1371, %v1371
    %v1376 = vpack.c.bf16 %v1373, %v1373
    %v1377 = vmul.f32 %v1343, %v225
    %v1378 = vmul.f32 %v1345, %v225
    %v1379 = vmul.f32 %v1357, %v226
    %v1380 = vmul.f32 %v1359, %v226
    %v1381 = vadd.f32 %v1377, %v1379
    %v1382 = vadd.f32 %v1378, %v1380
    %v1383 = vpack.c.bf16 %v1381, %v1381
    %v1384 = vpack.c.bf16 %v1382, %v1382
    %v1386 = vunpack.c.l.b16 %v1383
    %v1387 = vpack.c.b16 %v1386, %v1386
    %1388 = vrot.lane.b32.xlu0 %v1387, 64
    %v1389 = vpop.permute.xlu0 %1388
    %v1391 = vsel %vm442, %v1383, 0
    %v1394 = vsel %vm442, %v1389, 0
    %1396 = vmatpush.bf16.xpose.msra.mxu0 0
    %1397 = vmatpush.bf16.xpose.msra.mxu0 0
    %1398 = vmatpush.bf16.xpose.msra.mxu0 0
    %1399 = vmatpush.bf16.xpose.msra.mxu0 0
    %1400 = vmatpush.bf16.xpose.msra.mxu0 0
    %1401 = vmatpush.bf16.xpose.msra.mxu0 0
    %1402 = vmatpush.bf16.xpose.msra.mxu0 0
    %1403 = vmatpush.bf16.xpose.msra.mxu0 %v1394
    %1404 = vmatmul.bf16.gmra.mxu0 %v1391
    %v1405 = vpop.f32.mrf.mxu0
    %v1406 = vadd.f32 %v224, %v1405
    %v1407 = vpop.f32.mrf.mxu0
    %1408 = vdwg.mxu0
    %v1410 = vunpack.c.l.b16 %v1384
    %v1411 = vpack.c.b16 %v1410, %v1410
    %1412 = vrot.lane.b32.xlu0 %v1411, 64
    %v1413 = vpop.permute.xlu0 %1412
    %v1415 = vsel %vm442, %v1384, 0
    %v1418 = vsel %vm442, %v1413, 0
    %1420 = vmatpush.bf16.xpose.msra.mxu0 0
    %1421 = vmatpush.bf16.xpose.msra.mxu0 0
    %1422 = vmatpush.bf16.xpose.msra.mxu0 0
    %1423 = vmatpush.bf16.xpose.msra.mxu0 0
    %1424 = vmatpush.bf16.xpose.msra.mxu0 0
    %1425 = vmatpush.bf16.xpose.msra.mxu0 0
    %1426 = vmatpush.bf16.xpose.msra.mxu0 0
    %1427 = vmatpush.bf16.xpose.msra.mxu0 %v1418
    %1428 = vmatmul.bf16.gmra.mxu0 %v1415
    %v1429 = vpop.f32.mrf.mxu0
    %v1430 = vadd.f32 %v224, %v1429
    %v1431 = vpop.f32.mrf.mxu0
    %1432 = vdwg.mxu0
    %v1433 = vsel %vm486, %v1406, -inf
    %1434 = vmax.xlane.f32.xlu0 %v1433
    %v1435 = vpop.xlane.xlu0 %1434
    %v1436 = vsel %vm486, %v1430, -inf
    %1437 = vmax.xlane.f32.xlu0 %v1436
    %v1438 = vpop.xlane.xlu0 %1437
    %v1439 = vsub.f32 %v1406, %v1435
    %v1440 = vsub.f32 %v1430, %v1438
    %v1441 = vmul.f32 %v1439, 1.442695
    %v1442 = vpow.pop %v1441
    %v1443 = vmul.f32 %v1440, 1.442695
    %v1444 = vpow.pop %v1443
    %v1445 = vsel %vm486, %v1442, 0.0
    %1446 = vadd.xlane.f32.xlu0 %v1445
    %v1447 = vpop.xlane.xlu0 %1446
    %v1448 = vsel %vm486, %v1444, 0.0
    %1449 = vadd.xlane.f32.xlu0 %v1448
    %v1450 = vpop.xlane.xlu0 %1449
    %v1451 = vrcp.pop %v1447
    %v1452 = vrcp.pop %v1450
    %v1453 = vmul.f32 %v1442, %v1451
    %v1454 = vmul.f32 %v1444, %v1452
    %v1455 = vpack.c.bf16 %v1453, %v1453
    %v1456 = vpack.c.bf16 %v1454, %v1454
    %v1458 = vsel %vm486, %v1455, 0
    %v1461 = vsel %vm514, %v1375, 0
    %1463 = vmatpush.bf16.msra.mxu0 0
    %1464 = vmatpush.bf16.msra.mxu0 0
    %1465 = vmatpush.bf16.msra.mxu0 0
    %1466 = vmatpush.bf16.msra.mxu0 0
    %1467 = vmatpush.bf16.msra.mxu0 0
    %1468 = vmatpush.bf16.msra.mxu0 0
    %1469 = vmatpush.bf16.msra.mxu0 0
    %1470 = vmatpush.bf16.msra.mxu0 %v1461
    %1471 = vmatmul.bf16.gmra.mxu0 %v1458
    %v1472 = vpop.f32.mrf.mxu0
    %v1473 = vadd.f32 0.0, %v1472
    %v1474 = vpop.f32.mrf.mxu0
    %1475 = vdwg.mxu0
    %v1477 = vsel %vm486, %v1456, 0
    %v1480 = vsel %vm514, %v1376, 0
    %1482 = vmatpush.bf16.msra.mxu0 0
    %1483 = vmatpush.bf16.msra.mxu0 0
    %1484 = vmatpush.bf16.msra.mxu0 0
    %1485 = vmatpush.bf16.msra.mxu0 0
    %1486 = vmatpush.bf16.msra.mxu0 0
    %1487 = vmatpush.bf16.msra.mxu0 0
    %1488 = vmatpush.bf16.msra.mxu0 0
    %1489 = vmatpush.bf16.msra.mxu0 %v1480
    %1490 = vmatmul.bf16.gmra.mxu0 %v1477
    %v1491 = vpop.f32.mrf.mxu0
    %v1492 = vadd.f32 0.0, %v1491
    %v1493 = vpop.f32.mrf.mxu0
    %1494 = vdwg.mxu0
    %1495 = vrot.lane.b32.xlu0 %v1387, 112
    %v1496 = vpop.permute.xlu0 %1495
    %1497 = vrot.lane.b32.xlu0 %v1387, 48
    %v1498 = vpop.permute.xlu0 %1497
    %v1500 = vsel %vm442, %v1496, 0
    %v1503 = vsel %vm442, %v1498, 0
    %1505 = vmatpush.bf16.xpose.msra.mxu0 0
    %1506 = vmatpush.bf16.xpose.msra.mxu0 0
    %1507 = vmatpush.bf16.xpose.msra.mxu0 0
    %1508 = vmatpush.bf16.xpose.msra.mxu0 0
    %1509 = vmatpush.bf16.xpose.msra.mxu0 0
    %1510 = vmatpush.bf16.xpose.msra.mxu0 0
    %1511 = vmatpush.bf16.xpose.msra.mxu0 0
    %1512 = vmatpush.bf16.xpose.msra.mxu0 %v1503
    %1513 = vmatmul.bf16.gmra.mxu0 %v1500
    %v1514 = vpop.f32.mrf.mxu0
    %v1515 = vadd.f32 %v224, %v1514
    %v1516 = vpop.f32.mrf.mxu0
    %1517 = vdwg.mxu0
    %1518 = vrot.lane.b32.xlu0 %v1411, 112
    %v1519 = vpop.permute.xlu0 %1518
    %1520 = vrot.lane.b32.xlu0 %v1411, 48
    %v1521 = vpop.permute.xlu0 %1520
    %v1523 = vsel %vm442, %v1519, 0
    %v1526 = vsel %vm442, %v1521, 0
    %1528 = vmatpush.bf16.xpose.msra.mxu0 0
    %1529 = vmatpush.bf16.xpose.msra.mxu0 0
    %1530 = vmatpush.bf16.xpose.msra.mxu0 0
    %1531 = vmatpush.bf16.xpose.msra.mxu0 0
    %1532 = vmatpush.bf16.xpose.msra.mxu0 0
    %1533 = vmatpush.bf16.xpose.msra.mxu0 0
    %1534 = vmatpush.bf16.xpose.msra.mxu0 0
    %1535 = vmatpush.bf16.xpose.msra.mxu0 %v1526
    %1536 = vmatmul.bf16.gmra.mxu0 %v1523
    %v1537 = vpop.f32.mrf.mxu0
    %v1538 = vadd.f32 %v224, %v1537
    %v1539 = vpop.f32.mrf.mxu0
    %1540 = vdwg.mxu0
    %v1541 = vsel %vm486, %v1515, -inf
    %1542 = vmax.xlane.f32.xlu0 %v1541
    %v1543 = vpop.xlane.xlu0 %1542
    %v1544 = vsel %vm486, %v1538, -inf
    %1545 = vmax.xlane.f32.xlu0 %v1544
    %v1546 = vpop.xlane.xlu0 %1545
    %v1547 = vsub.f32 %v1515, %v1543
    %v1548 = vsub.f32 %v1538, %v1546
    %v1549 = vmul.f32 %v1547, 1.442695
    %v1550 = vpow.pop %v1549
    %v1551 = vmul.f32 %v1548, 1.442695
    %v1552 = vpow.pop %v1551
    %v1553 = vsel %vm486, %v1550, 0.0
    %1554 = vadd.xlane.f32.xlu0 %v1553
    %v1555 = vpop.xlane.xlu0 %1554
    %v1556 = vsel %vm486, %v1552, 0.0
    %1557 = vadd.xlane.f32.xlu0 %v1556
    %v1558 = vpop.xlane.xlu0 %1557
    %v1559 = vrcp.pop %v1555
    %v1560 = vrcp.pop %v1558
    %v1561 = vmul.f32 %v1550, %v1559
    %v1562 = vmul.f32 %v1552, %v1560
    %v1563 = vpack.c.bf16 %v1561, %v1561
    %v1564 = vpack.c.bf16 %v1562, %v1562
    %v1566 = vunpack.c.l.b16 %v1375
    %v1567 = vpack.c.b16 %v1566, %v1566
    %1568 = vrot.lane.b32.xlu0 %v1567, 112
    %v1569 = vpop.permute.xlu0 %1568
    %v1571 = vsel %vm486, %v1563, 0
    %v1574 = vsel %vm514, %v1569, 0
    %1576 = vmatpush.bf16.msra.mxu0 0
    %1577 = vmatpush.bf16.msra.mxu0 0
    %1578 = vmatpush.bf16.msra.mxu0 0
    %1579 = vmatpush.bf16.msra.mxu0 0
    %1580 = vmatpush.bf16.msra.mxu0 0
    %1581 = vmatpush.bf16.msra.mxu0 0
    %1582 = vmatpush.bf16.msra.mxu0 0
    %1583 = vmatpush.bf16.msra.mxu0 %v1574
    %1584 = vmatmul.bf16.gmra.mxu0 %v1571
    %v1585 = vpop.f32.mrf.mxu0
    %v1586 = vadd.f32 0.0, %v1585
    %v1587 = vpop.f32.mrf.mxu0
    %1588 = vdwg.mxu0
    %v1590 = vunpack.c.l.b16 %v1376
    %v1591 = vpack.c.b16 %v1590, %v1590
    %1592 = vrot.lane.b32.xlu0 %v1591, 112
    %v1593 = vpop.permute.xlu0 %1592
    %v1595 = vsel %vm486, %v1564, 0
    %v1598 = vsel %vm514, %v1593, 0
    %1600 = vmatpush.bf16.msra.mxu0 0
    %1601 = vmatpush.bf16.msra.mxu0 0
    %1602 = vmatpush.bf16.msra.mxu0 0
    %1603 = vmatpush.bf16.msra.mxu0 0
    %1604 = vmatpush.bf16.msra.mxu0 0
    %1605 = vmatpush.bf16.msra.mxu0 0
    %1606 = vmatpush.bf16.msra.mxu0 0
    %1607 = vmatpush.bf16.msra.mxu0 %v1598
    %1608 = vmatmul.bf16.gmra.mxu0 %v1595
    %v1609 = vpop.f32.mrf.mxu0
    %v1610 = vadd.f32 0.0, %v1609
    %v1611 = vpop.f32.mrf.mxu0
    %1612 = vdwg.mxu0
    %1613 = vrot.lane.b32.xlu0 %v1387, 96
    %v1614 = vpop.permute.xlu0 %1613
    %1615 = vrot.lane.b32.xlu0 %v1387, 32
    %v1616 = vpop.permute.xlu0 %1615
    %v1618 = vsel %vm442, %v1614, 0
    %v1621 = vsel %vm442, %v1616, 0
    %1623 = vmatpush.bf16.xpose.msra.mxu0 0
    %1624 = vmatpush.bf16.xpose.msra.mxu0 0
    %1625 = vmatpush.bf16.xpose.msra.mxu0 0
    %1626 = vmatpush.bf16.xpose.msra.mxu0 0
    %1627 = vmatpush.bf16.xpose.msra.mxu0 0
    %1628 = vmatpush.bf16.xpose.msra.mxu0 0
    %1629 = vmatpush.bf16.xpose.msra.mxu0 0
    %1630 = vmatpush.bf16.xpose.msra.mxu0 %v1621
    %1631 = vmatmul.bf16.gmra.mxu0 %v1618
    %v1632 = vpop.f32.mrf.mxu0
    %v1633 = vadd.f32 %v224, %v1632
    %v1634 = vpop.f32.mrf.mxu0
    %1635 = vdwg.mxu0
    %1636 = vrot.lane.b32.xlu0 %v1411, 96
    %v1637 = vpop.permute.xlu0 %1636
    %1638 = vrot.lane.b32.xlu0 %v1411, 32
    %v1639 = vpop.permute.xlu0 %1638
    %v1641 = vsel %vm442, %v1637, 0
    %v1644 = vsel %vm442, %v1639, 0
    %1646 = vmatpush.bf16.xpose.msra.mxu0 0
    %1647 = vmatpush.bf16.xpose.msra.mxu0 0
    %1648 = vmatpush.bf16.xpose.msra.mxu0 0
    %1649 = vmatpush.bf16.xpose.msra.mxu0 0
    %1650 = vmatpush.bf16.xpose.msra.mxu0 0
    %1651 = vmatpush.bf16.xpose.msra.mxu0 0
    %1652 = vmatpush.bf16.xpose.msra.mxu0 0
    %1653 = vmatpush.bf16.xpose.msra.mxu0 %v1644
    %1654 = vmatmul.bf16.gmra.mxu0 %v1641
    %v1655 = vpop.f32.mrf.mxu0
    %v1656 = vadd.f32 %v224, %v1655
    %v1657 = vpop.f32.mrf.mxu0
    %1658 = vdwg.mxu0
    %v1659 = vsel %vm486, %v1633, -inf
    %1660 = vmax.xlane.f32.xlu0 %v1659
    %v1661 = vpop.xlane.xlu0 %1660
    %v1662 = vsel %vm486, %v1656, -inf
    %1663 = vmax.xlane.f32.xlu0 %v1662
    %v1664 = vpop.xlane.xlu0 %1663
    %v1665 = vsub.f32 %v1633, %v1661
    %v1666 = vsub.f32 %v1656, %v1664
    %v1667 = vmul.f32 %v1665, 1.442695
    %v1668 = vpow.pop %v1667
    %v1669 = vmul.f32 %v1666, 1.442695
    %v1670 = vpow.pop %v1669
    %v1671 = vsel %vm486, %v1668, 0.0
    %1672 = vadd.xlane.f32.xlu0 %v1671
    %v1673 = vpop.xlane.xlu0 %1672
    %v1674 = vsel %vm486, %v1670, 0.0
    %1675 = vadd.xlane.f32.xlu0 %v1674
    %v1676 = vpop.xlane.xlu0 %1675
    %v1677 = vrcp.pop %v1673
    %v1678 = vrcp.pop %v1676
    %v1679 = vmul.f32 %v1668, %v1677
    %v1680 = vmul.f32 %v1670, %v1678
    %v1681 = vpack.c.bf16 %v1679, %v1679
    %v1682 = vpack.c.bf16 %v1680, %v1680
    %1683 = vrot.lane.b32.xlu0 %v1567, 96
    %v1684 = vpop.permute.xlu0 %1683
    %v1686 = vsel %vm486, %v1681, 0
    %v1689 = vsel %vm514, %v1684, 0
    %1691 = vmatpush.bf16.msra.mxu0 0
    %1692 = vmatpush.bf16.msra.mxu0 0
    %1693 = vmatpush.bf16.msra.mxu0 0
    %1694 = vmatpush.bf16.msra.mxu0 0
    %1695 = vmatpush.bf16.msra.mxu0 0
    %1696 = vmatpush.bf16.msra.mxu0 0
    %1697 = vmatpush.bf16.msra.mxu0 0
    %1698 = vmatpush.bf16.msra.mxu0 %v1689
    %1699 = vmatmul.bf16.gmra.mxu0 %v1686
    %v1700 = vpop.f32.mrf.mxu0
    %v1701 = vadd.f32 0.0, %v1700
    %v1702 = vpop.f32.mrf.mxu0
    %1703 = vdwg.mxu0
    %1704 = vrot.lane.b32.xlu0 %v1591, 96
    %v1705 = vpop.permute.xlu0 %1704
    %v1707 = vsel %vm486, %v1682, 0
    %v1710 = vsel %vm514, %v1705, 0
    %1712 = vmatpush.bf16.msra.mxu0 0
    %1713 = vmatpush.bf16.msra.mxu0 0
    %1714 = vmatpush.bf16.msra.mxu0 0
    %1715 = vmatpush.bf16.msra.mxu0 0
    %1716 = vmatpush.bf16.msra.mxu0 0
    %1717 = vmatpush.bf16.msra.mxu0 0
    %1718 = vmatpush.bf16.msra.mxu0 0
    %1719 = vmatpush.bf16.msra.mxu0 %v1710
    %1720 = vmatmul.bf16.gmra.mxu0 %v1707
    %v1721 = vpop.f32.mrf.mxu0
    %v1722 = vadd.f32 0.0, %v1721
    %v1723 = vpop.f32.mrf.mxu0
    %1724 = vdwg.mxu0
    %1725 = vrot.lane.b32.xlu0 %v1387, 80
    %v1726 = vpop.permute.xlu0 %1725
    %1727 = vrot.lane.b32.xlu0 %v1387, 16
    %v1728 = vpop.permute.xlu0 %1727
    %v1730 = vsel %vm442, %v1726, 0
    %v1733 = vsel %vm442, %v1728, 0
    %1735 = vmatpush.bf16.xpose.msra.mxu0 0
    %1736 = vmatpush.bf16.xpose.msra.mxu0 0
    %1737 = vmatpush.bf16.xpose.msra.mxu0 0
    %1738 = vmatpush.bf16.xpose.msra.mxu0 0
    %1739 = vmatpush.bf16.xpose.msra.mxu0 0
    %1740 = vmatpush.bf16.xpose.msra.mxu0 0
    %1741 = vmatpush.bf16.xpose.msra.mxu0 0
    %1742 = vmatpush.bf16.xpose.msra.mxu0 %v1733
    %1743 = vmatmul.bf16.gmra.mxu0 %v1730
    %v1744 = vpop.f32.mrf.mxu0
    %v1745 = vadd.f32 %v224, %v1744
    %v1746 = vpop.f32.mrf.mxu0
    %1747 = vdwg.mxu0
    %1748 = vrot.lane.b32.xlu0 %v1411, 80
    %v1749 = vpop.permute.xlu0 %1748
    %1750 = vrot.lane.b32.xlu0 %v1411, 16
    %v1751 = vpop.permute.xlu0 %1750
    %v1753 = vsel %vm442, %v1749, 0
    %v1756 = vsel %vm442, %v1751, 0
    %1758 = vmatpush.bf16.xpose.msra.mxu0 0
    %1759 = vmatpush.bf16.xpose.msra.mxu0 0
    %1760 = vmatpush.bf16.xpose.msra.mxu0 0
    %1761 = vmatpush.bf16.xpose.msra.mxu0 0
    %1762 = vmatpush.bf16.xpose.msra.mxu0 0
    %1763 = vmatpush.bf16.xpose.msra.mxu0 0
    %1764 = vmatpush.bf16.xpose.msra.mxu0 0
    %1765 = vmatpush.bf16.xpose.msra.mxu0 %v1756
    %1766 = vmatmul.bf16.gmra.mxu0 %v1753
    %v1767 = vpop.f32.mrf.mxu0
    %v1768 = vadd.f32 %v224, %v1767
    %v1769 = vpop.f32.mrf.mxu0
    %1770 = vdwg.mxu0
    %v1771 = vsel %vm486, %v1745, -inf
    %1772 = vmax.xlane.f32.xlu0 %v1771
    %v1773 = vpop.xlane.xlu0 %1772
    %v1774 = vsel %vm486, %v1768, -inf
    %1775 = vmax.xlane.f32.xlu0 %v1774
    %v1776 = vpop.xlane.xlu0 %1775
    %v1777 = vsub.f32 %v1745, %v1773
    %v1778 = vsub.f32 %v1768, %v1776
    %v1779 = vmul.f32 %v1777, 1.442695
    %v1780 = vpow.pop %v1779
    %v1781 = vmul.f32 %v1778, 1.442695
    %v1782 = vpow.pop %v1781
    %v1783 = vsel %vm486, %v1780, 0.0
    %1784 = vadd.xlane.f32.xlu0 %v1783
    %v1785 = vpop.xlane.xlu0 %1784
    %v1786 = vsel %vm486, %v1782, 0.0
    %1787 = vadd.xlane.f32.xlu0 %v1786
    %v1788 = vpop.xlane.xlu0 %1787
    %v1789 = vrcp.pop %v1785
    %v1790 = vrcp.pop %v1788
    %v1791 = vmul.f32 %v1780, %v1789
    %v1792 = vmul.f32 %v1782, %v1790
    %v1793 = vpack.c.bf16 %v1791, %v1791
    %v1794 = vpack.c.bf16 %v1792, %v1792
    %1795 = vrot.lane.b32.xlu0 %v1567, 80
    %v1796 = vpop.permute.xlu0 %1795
    %v1798 = vsel %vm486, %v1793, 0
    %v1801 = vsel %vm514, %v1796, 0
    %1803 = vmatpush.bf16.msra.mxu0 0
    %1804 = vmatpush.bf16.msra.mxu0 0
    %1805 = vmatpush.bf16.msra.mxu0 0
    %1806 = vmatpush.bf16.msra.mxu0 0
    %1807 = vmatpush.bf16.msra.mxu0 0
    %1808 = vmatpush.bf16.msra.mxu0 0
    %1809 = vmatpush.bf16.msra.mxu0 0
    %1810 = vmatpush.bf16.msra.mxu0 %v1801
    %1811 = vmatmul.bf16.gmra.mxu0 %v1798
    %v1812 = vpop.f32.mrf.mxu0
    %v1813 = vadd.f32 0.0, %v1812
    %v1814 = vpop.f32.mrf.mxu0
    %1815 = vdwg.mxu0
    %1816 = vrot.lane.b32.xlu0 %v1591, 80
    %v1817 = vpop.permute.xlu0 %1816
    %v1819 = vsel %vm486, %v1794, 0
    %v1822 = vsel %vm514, %v1817, 0
    %1824 = vmatpush.bf16.msra.mxu0 0
    %1825 = vmatpush.bf16.msra.mxu0 0
    %1826 = vmatpush.bf16.msra.mxu0 0
    %1827 = vmatpush.bf16.msra.mxu0 0
    %1828 = vmatpush.bf16.msra.mxu0 0
    %1829 = vmatpush.bf16.msra.mxu0 0
    %1830 = vmatpush.bf16.msra.mxu0 0
    %1831 = vmatpush.bf16.msra.mxu0 %v1822
    %1832 = vmatmul.bf16.gmra.mxu0 %v1819
    %v1833 = vpop.f32.mrf.mxu0
    %v1834 = vadd.f32 0.0, %v1833
    %v1835 = vpop.f32.mrf.mxu0
    %1836 = vdwg.mxu0
    %1839 = vrot.lane.b32.xlu0 %v1586, 16
    %v1840 = vpop.permute.xlu0 %1839
    %1841 = vrot.lane.b32.xlu0 %v1610, 16
    %v1842 = vpop.permute.xlu0 %1841
    %1847 = vrot.lane.b32.xlu0 %v1701, 32
    %v1848 = vpop.permute.xlu0 %1847
    %1849 = vrot.lane.b32.xlu0 %v1722, 32
    %v1850 = vpop.permute.xlu0 %1849
    %1855 = vrot.lane.b32.xlu0 %v1813, 48
    %v1856 = vpop.permute.xlu0 %1855
    %1857 = vrot.lane.b32.xlu0 %v1834, 48
    %v1858 = vpop.permute.xlu0 %1857
    %v1861 = vsel %vm442, %v1473, %v1840
    %v1862 = vsel %vm442, %v1492, %v1842
    %v1863 = vsel %vm918, %v1861, %v1848
    %v1864 = vsel %vm918, %v1862, %v1850
    %v1865 = vsel %vm921, %v1863, %v1856
    %v1866 = vsel %vm921, %v1864, %v1858
    %v1867 = vpack.c.bf16 %v1866, %v1865
    %v1876 = vunpack.c.l.b16 %v1207
    %v1877 = vunpack.c.l.b16 %v1208
    %v1878 = vunpack.c.l.b16 %v1209
    %v1879 = vunpack.c.l.b16 %v1210
    %v1880 = vunpack.c.l.b16 %v1211
    %v1881 = vunpack.c.l.b16 %v1212
    %v1882 = vunpack.c.l.b16 %v1213
    %v1883 = vunpack.c.l.b16 %v1214
    %v1884 = vpack.c.b16 %v1877, %v1876
    %v1885 = vpack.c.b16 %v1879, %v1878
    %v1886 = vpack.c.b16 %v1881, %v1880
    %v1887 = vpack.c.b16 %v1883, %v1882
    %v1893 = vsel %vm277, %v1867, 0
    %1895 = vmatpush.bf16.msra.mxu0 0
    %1896 = vmatpush.bf16.msra.mxu0 0
    %1897 = vmatpush.bf16.msra.mxu0 0
    %1898 = vmatpush.bf16.msra.mxu0 0
    %1899 = vmatpush.bf16.msra.mxu0 %v1887
    %1900 = vmatpush.bf16.msra.mxu0 %v1886
    %1901 = vmatpush.bf16.msra.mxu0 %v1885
    %1902 = vmatpush.bf16.msra.mxu0 %v1884
    %1903 = vmatmul.bf16.gmra.mxu0 %v1893
    %v1904 = vpop.f32.mrf.mxu0
    %v1905 = vadd.f32 0.0, %v1904
    %v1906 = vpop.f32.mrf.mxu0
    %v1907 = vadd.f32 0.0, %v1906
    %1908 = vdwg.mxu0
    %v1909 = vadd.f32 %v1179, %v1905
    %v1910 = vadd.f32 %v1180, %v1907
    %v1911 = vmul.f32 %v1909, %v1909
    %v1912 = vmul.f32 %v1910, %v1910
    %v1913 = vsel %vm277, %v1911, 0.0
    %1914 = vadd.xlane.f32.xlu0 %v1913
    %v1915 = vpop.xlane.xlu0 %1914
    %v1916 = vsel %vm277, %v1912, 0.0
    %1917 = vadd.xlane.f32.xlu0 %v1916
    %v1918 = vpop.xlane.xlu0 %1917
    %v1919 = vmul.f32 %v1915, %v290
    %v1920 = vmul.f32 %v1918, %v290
    %v1921 = vadd.f32 %v1919, 1e-05
    %v1922 = vadd.f32 %v1920, 1e-05
    %v1923 = vrsqrt.pop %v1921
    %v1924 = vmul.f32 %v1923, %v1921
    %v1925 = vmul.f32 %v1924, %v1923
    %v1926 = vmul.f32 0.5, %v1925
    %v1927 = vsub.f32 1.5, %v1926
    %v1928 = vmul.f32 %v1923, %v1927
    %vm1929 = vweird.f32 %v1921
    %vm1930 = vweird.f32 %v1923
    %vm1931 = vmor %vm1929, %vm1930
    %v1932 = vsel %vm1931, %v1923, %v1928
    %v1933 = vrsqrt.pop %v1922
    %v1934 = vmul.f32 %v1933, %v1922
    %v1935 = vmul.f32 %v1934, %v1933
    %v1936 = vmul.f32 0.5, %v1935
    %v1937 = vsub.f32 1.5, %v1936
    %v1938 = vmul.f32 %v1933, %v1937
    %vm1939 = vweird.f32 %v1922
    %vm1940 = vweird.f32 %v1933
    %vm1941 = vmor %vm1939, %vm1940
    %v1942 = vsel %vm1941, %v1933, %v1938
    %v1943 = vmul.f32 %v1909, %v1932
    %v1944 = vmul.f32 %v1910, %v1942
    %v1945 = vpack.c.bf16 %v1944, %v1943
    %v1954 = vunpack.c.l.b16 %v1182
    %v1955 = vunpack.c.h.b16 %v1182
    %v1956 = vunpack.c.l.b16 %v1185
    %v1957 = vunpack.c.h.b16 %v1185
    %v1958 = vunpack.c.l.b16 %v1188
    %v1959 = vunpack.c.h.b16 %v1188
    %v1960 = vunpack.c.l.b16 %v1191
    %v1961 = vunpack.c.h.b16 %v1191
    %v1962 = vunpack.c.l.b16 %v1194
    %v1963 = vunpack.c.h.b16 %v1194
    %v1964 = vunpack.c.l.b16 %v1197
    %v1965 = vunpack.c.h.b16 %v1197
    %v1966 = vunpack.c.l.b16 %v1200
    %v1967 = vunpack.c.h.b16 %v1200
    %v1968 = vunpack.c.l.b16 %v1203
    %v1969 = vunpack.c.h.b16 %v1203
    %v1970 = vpack.c.b16 %v1956, %v1954
    %v1971 = vpack.c.b16 %v1957, %v1955
    %v1972 = vpack.c.b16 %v1960, %v1958
    %v1973 = vpack.c.b16 %v1961, %v1959
    %v1974 = vpack.c.b16 %v1964, %v1962
    %v1975 = vpack.c.b16 %v1965, %v1963
    %v1976 = vpack.c.b16 %v1968, %v1966
    %v1977 = vpack.c.b16 %v1969, %v1967
    %v1987 = vsel %vm277, %v1945, 0
    %1989 = vmatpush.bf16.msra.mxu0 0
    %1990 = vmatpush.bf16.msra.mxu0 0
    %1991 = vmatpush.bf16.msra.mxu0 0
    %1992 = vmatpush.bf16.msra.mxu0 0
    %1993 = vmatpush.bf16.msra.mxu0 %v1976
    %1994 = vmatpush.bf16.msra.mxu0 %v1974
    %1995 = vmatpush.bf16.msra.mxu0 %v1972
    %1996 = vmatpush.bf16.msra.mxu0 %v1970
    %1997 = vmatmul.bf16.gmra.mxu0 %v1987
    %v1998 = vpop.f32.mrf.mxu0
    %v1999 = vadd.f32 0.0, %v1998
    %v2000 = vpop.f32.mrf.mxu0
    %v2001 = vadd.f32 0.0, %v2000
    %2002 = vdwg.mxu0
    %2003 = vmatpush.bf16.msra.mxu0 0
    %2004 = vmatpush.bf16.msra.mxu0 0
    %2005 = vmatpush.bf16.msra.mxu0 0
    %2006 = vmatpush.bf16.msra.mxu0 0
    %2007 = vmatpush.bf16.msra.mxu0 %v1977
    %2008 = vmatpush.bf16.msra.mxu0 %v1975
    %2009 = vmatpush.bf16.msra.mxu0 %v1973
    %2010 = vmatpush.bf16.msra.mxu0 %v1971
    %2011 = vmatmul.bf16.gmra.mxu0 %v1987
    %v2012 = vpop.f32.mrf.mxu0
    %v2013 = vadd.f32 0.0, %v2012
    %v2014 = vpop.f32.mrf.mxu0
    %v2015 = vadd.f32 0.0, %v2014
    %2016 = vdwg.mxu0
    %v2017 = vxor.u32 %v1999, 2147483648
    %v2018 = vxor.u32 %v2001, 2147483648
    %v2019 = vmul.f32 %v2017, 1.442695
    %v2020 = vpow.pop %v2019
    %v2021 = vmul.f32 %v2018, 1.442695
    %v2022 = vpow.pop %v2021
    %v2023 = vadd.f32 %v2020, 1.0
    %v2024 = vadd.f32 %v2022, 1.0
    %v2025 = vrcp.pop %v2023
    %v2026 = vmul.f32 %v2023, %v2025
    %v2027 = vsub.f32 1.0, %v2026
    %v2028 = vmul.f32 %v2025, %v2027
    %v2029 = vadd.f32 %v2025, %v2028
    %vm2030 = vweird.f32 %v2023
    %vm2031 = vweird.f32 %v2025
    %vm2032 = vmor %vm2030, %vm2031
    %v2033 = vsel %vm2032, %v2025, %v2029
    %v2034 = vand.u32 2147483647, %v2023
    %vm2035 = vcmp.eq.f32.partialorder %v2034, 8.507059e+37
    %v2036 = vand.u32 %v2023, 2147483648
    %v2037 = vor.u32 1.1754944e-38, %v2036
    %v2038 = vsel %vm2035, %v2037, %v2033
    %v2039 = vmul.f32 1.0, %v2038
    %v2040 = vrcp.pop %v2024
    %v2041 = vmul.f32 %v2024, %v2040
    %v2042 = vsub.f32 1.0, %v2041
    %v2043 = vmul.f32 %v2040, %v2042
    %v2044 = vadd.f32 %v2040, %v2043
    %vm2045 = vweird.f32 %v2024
    %vm2046 = vweird.f32 %v2040
    %vm2047 = vmor %vm2045, %vm2046
    %v2048 = vsel %vm2047, %v2040, %v2044
    %v2049 = vand.u32 2147483647, %v2024
    %vm2050 = vcmp.eq.f32.partialorder %v2049, 8.507059e+37
    %v2051 = vand.u32 %v2024, 2147483648
    %v2052 = vor.u32 1.1754944e-38, %v2051
    %v2053 = vsel %vm2050, %v2052, %v2048
    %v2054 = vmul.f32 1.0, %v2053
    %v2055 = vmul.f32 %v1999, %v2039
    %v2056 = vmul.f32 %v2001, %v2054
    %v2057 = vmul.f32 %v2055, %v2013
    %v2058 = vmul.f32 %v2056, %v2015
    %v2059 = vpack.c.bf16 %v2058, %v2057
    %v2076 = vunpack.c.l.b16 %v1215
    %v2077 = vunpack.c.l.b16 %v1216
    %v2078 = vunpack.c.l.b16 %v1217
    %v2079 = vunpack.c.l.b16 %v1218
    %v2080 = vunpack.c.l.b16 %v1219
    %v2081 = vunpack.c.l.b16 %v1220
    %v2082 = vunpack.c.l.b16 %v1221
    %v2083 = vunpack.c.l.b16 %v1222
    %v2084 = vunpack.c.l.b16 %v1223
    %v2085 = vunpack.c.l.b16 %v1224
    %v2086 = vunpack.c.l.b16 %v1225
    %v2087 = vunpack.c.l.b16 %v1226
    %v2088 = vunpack.c.l.b16 %v1227
    %v2089 = vunpack.c.l.b16 %v1228
    %v2090 = vunpack.c.l.b16 %v1229
    %v2091 = vunpack.c.l.b16 %v1230
    %v2092 = vpack.c.b16 %v2077, %v2076
    %v2093 = vpack.c.b16 %v2079, %v2078
    %v2094 = vpack.c.b16 %v2081, %v2080
    %v2095 = vpack.c.b16 %v2083, %v2082
    %v2096 = vpack.c.b16 %v2085, %v2084
    %v2097 = vpack.c.b16 %v2087, %v2086
    %v2098 = vpack.c.b16 %v2089, %v2088
    %v2099 = vpack.c.b16 %v2091, %v2090
    %2108 = vmatpush.bf16.msra.mxu0 %v2099
    %2109 = vmatpush.bf16.msra.mxu0 %v2098
    %2110 = vmatpush.bf16.msra.mxu0 %v2097
    %2111 = vmatpush.bf16.msra.mxu0 %v2096
    %2112 = vmatpush.bf16.msra.mxu0 %v2095
    %2113 = vmatpush.bf16.msra.mxu0 %v2094
    %2114 = vmatpush.bf16.msra.mxu0 %v2093
    %2115 = vmatpush.bf16.msra.mxu0 %v2092
    %2116 = vmatmul.bf16.gmra.mxu0 %v2059
    %v2117 = vpop.f32.mrf.mxu0
    %v2118 = vadd.f32 0.0, %v2117
    %v2119 = vpop.f32.mrf.mxu0
    %v2120 = vadd.f32 0.0, %v2119
    %2121 = vdwg.mxu0
    %v2122 = vadd.f32 %v1909, %v2118
    %v2123 = vadd.f32 %v1910, %v2120
    %v2124 = vmul.f32 %v2122, %v2122
    %v2125 = vmul.f32 %v2123, %v2123
    %v2128 = vrot.slane %v2125, 7
    %vm2131 = vcmask 523271
    %v2132 = vsel %vm2131, %v2124, 0.0
    %2133 = vadd.xlane.f32.xlu0 %v2132
    %v2134 = vpop.xlane.xlu0 %2133
    %vm2135 = vcmask 516096
    %v2136 = vsel %vm2135, %v2128, 0.0
    %2137 = vadd.xlane.f32.xlu0 %v2136
    %v2138 = vpop.xlane.xlu0 %2137
    %v2139 = vmul.f32 %v2134, %v290
    %v2140 = vmul.f32 %v2138, %v290
    %v2141 = vadd.f32 %v2139, 1e-05
    %v2142 = vadd.f32 %v2140, 1e-05
    %v2143 = vrsqrt.pop %v2141
    %v2144 = vmul.f32 %v2143, %v2141
    %v2145 = vmul.f32 %v2144, %v2143
    %v2146 = vmul.f32 0.5, %v2145
    %v2147 = vsub.f32 1.5, %v2146
    %v2148 = vmul.f32 %v2143, %v2147
    %vm2149 = vweird.f32 %v2141
    %vm2150 = vweird.f32 %v2143
    %vm2151 = vmor %vm2149, %vm2150
    %v2152 = vsel %vm2151, %v2143, %v2148
    %v2153 = vrsqrt.pop %v2142
    %v2154 = vmul.f32 %v2153, %v2142
    %v2155 = vmul.f32 %v2154, %v2153
    %v2156 = vmul.f32 0.5, %v2155
    %v2157 = vsub.f32 1.5, %v2156
    %v2158 = vmul.f32 %v2153, %v2157
    %vm2159 = vweird.f32 %v2142
    %vm2160 = vweird.f32 %v2153
    %vm2161 = vmor %vm2159, %vm2160
    %v2162 = vsel %vm2161, %v2153, %v2158
    %v2165 = vrot.slane %v2162, 1
    %v2168 = vmul.f32 %v2122, %v2152
    %v2169 = vmul.f32 %v2123, %v2165
    %v2170 = vld [vmem:[%s5] sm:$0xff]
    %v2171 = vld [vmem:[%s5 + $0x8] sm:$0xff]
    %v2172 = vld [vmem:[%s5 + $0x10] sm:$0xff]
    %v2173 = vld [vmem:[%s5 + $0x18] sm:$0xff]
    %v2174 = vld [vmem:[%s5 + $0x20] sm:$0xff]
    %v2175 = vld [vmem:[%s5 + $0x28] sm:$0xff]
    %v2176 = vld [vmem:[%s5 + $0x30] sm:$0xff]
    %v2177 = vld [vmem:[%s5 + $0x38] sm:$0xff]
    %v2178 = vpack.c.bf16 %v2168, %v2168
    %v2179 = vpack.c.bf16 %v2169, %v2169
    %v2182 = vunpack.c.l.b16 %v2178
    %v2183 = vunpack.c.l.b16 %v2179
    %v2184 = vrot.slane %v2182, 7
    %v2185 = vrot.slane %v2183, 6
    %vm2186 = vcmask 1041409
    %v2187 = vsel %vm2186, %v2185, %v2184
    %v2188 = vpack.c.b16 %v2187, %v2187
    %v2197 = vunpack.c.l.b16 %v2170
    %v2198 = vunpack.c.h.b16 %v2170
    %v2199 = vunpack.c.l.b16 %v2171
    %v2200 = vunpack.c.h.b16 %v2171
    %v2201 = vunpack.c.l.b16 %v2172
    %v2202 = vunpack.c.h.b16 %v2172
    %v2203 = vunpack.c.l.b16 %v2173
    %v2204 = vunpack.c.h.b16 %v2173
    %v2205 = vunpack.c.l.b16 %v2174
    %v2206 = vunpack.c.h.b16 %v2174
    %v2207 = vunpack.c.l.b16 %v2175
    %v2208 = vunpack.c.h.b16 %v2175
    %v2209 = vunpack.c.l.b16 %v2176
    %v2210 = vunpack.c.h.b16 %v2176
    %v2211 = vunpack.c.l.b16 %v2177
    %v2212 = vunpack.c.h.b16 %v2177
    %v2213 = vpack.c.b16 %v2199, %v2197
    %v2214 = vpack.c.b16 %v2200, %v2198
    %v2215 = vpack.c.b16 %v2203, %v2201
    %v2216 = vpack.c.b16 %v2204, %v2202
    %v2217 = vpack.c.b16 %v2207, %v2205
    %v2218 = vpack.c.b16 %v2208, %v2206
    %v2219 = vpack.c.b16 %v2211, %v2209
    %v2220 = vpack.c.b16 %v2212, %v2210
    %v2230 = vsel %vm277, %v2188, 0
    %2232 = vmatpush.bf16.msra.mxu0 0
    %2233 = vmatpush.bf16.msra.mxu0 0
    %2234 = vmatpush.bf16.msra.mxu0 0
    %2235 = vmatpush.bf16.msra.mxu0 0
    %2236 = vmatpush.bf16.msra.mxu0 %v2219
    %2237 = vmatpush.bf16.msra.mxu0 %v2217
    %2238 = vmatpush.bf16.msra.mxu0 %v2215
    %2239 = vmatpush.bf16.msra.mxu0 %v2213
    %2240 = vmatmul.bf16.gmra.mxu0 %v2230
    %v2241 = vpop.f32.mrf.mxu0
    %v2242 = vadd.f32 0.0, %v2241
    %v2243 = vpop.f32.mrf.mxu0
    %2244 = vdwg.mxu0
    %2245 = vmatpush.bf16.msra.mxu0 0
    %2246 = vmatpush.bf16.msra.mxu0 0
    %2247 = vmatpush.bf16.msra.mxu0 0
    %2248 = vmatpush.bf16.msra.mxu0 0
    %2249 = vmatpush.bf16.msra.mxu0 %v2220
    %2250 = vmatpush.bf16.msra.mxu0 %v2218
    %2251 = vmatpush.bf16.msra.mxu0 %v2216
    %2252 = vmatpush.bf16.msra.mxu0 %v2214
    %2253 = vmatmul.bf16.gmra.mxu0 %v2230
    %v2254 = vpop.f32.mrf.mxu0
    %v2255 = vadd.f32 0.0, %v2254
    %v2256 = vpop.f32.mrf.mxu0
    %2257 = vdwg.mxu0
    %v2260 = vrot.slane %v2255, 6
    %vm2261 = vcmask 1041408
    %v2262 = vsel %vm2261, %v2242, %v2260
    %2264 = vst [vmem:[%s6] sm:$0xf] %v2262
    // Predicated region
    $region30: #{forward.1} parent=1 // pred_check
      _
    $region31: #{forward.1} parent=1 // pred_check_branch
      %2266 = sbr.rel (0) target = $region33
    $region32: #{forward.1} parent=1 // pred_region
      _
    $region33: #{forward.1} parent=1 // pred_fallthru
      _
    // Predicated region
    $region34: #{forward.1} parent=1 // pred_check
      _
    $region35: #{forward.1} parent=1 // pred_check_branch
      %2268 = sbr.rel (0) target = $region37
    $region36: #{forward.1} parent=1 // pred_region
      _
    $region37: #{forward.1} parent=1 // pred_fallthru
      _
    %2269 = vsyncpa [#allocation3], 1

</llo_original>
